<compile_context>
chip_gen: v7x
topology: tpu7x:2x2x1
jax: 0.10.0
libtpu: 0.0.40
codegen_flags: <defaults>
</compile_context>

<pallas_src>
import jax
import jax.numpy as jnp
from jax.experimental import pallas as pl
from jax.experimental.pallas import tpu as pltpu


def _matting_head_kernel(top_ref, body_ref, bot_ref, w1_ref, bias_ref, w2_ref,
                         b2_ref, o_ref):
    # top_ref  : (1, 1,  W+2, Cin)  halo row above the tile (garbage at t == 0)
    # body_ref : (1, tH, W+2, Cin)  tile rows
    # bot_ref  : (1, 1,  W+2, Cin)  halo row below the tile (garbage at last t)
    # w1_ref   : (9*Cin, Cmid)      conv3x3 weights, BN-folded, (dy, dx, c)-major
    # bias_ref : (1, Cmid)          conv3x3 bias with BN shift folded in
    # w2_ref   : (Cmid, 1)          conv1x1 weights
    # b2_ref   : (1,) in SMEM       conv1x1 bias
    # o_ref    : (1, 1, 1, tH*W)    lane-dense output row for this tile
    t = pl.program_id(1)
    n_t = pl.num_programs(1)

    body = body_ref[0]                                   # (tH, W+2, Cin)
    th, wp2, cin = body.shape
    w = wp2 - 2

    # Halo rows: zero at the image top/bottom (conv padding), real rows otherwise.
    top = jnp.where(t == 0, 0.0, top_ref[0])             # (1, W+2, Cin)
    bot = jnp.where(t == n_t - 1, 0.0, bot_ref[0])       # (1, W+2, Cin)
    xp = jnp.concatenate([top, body, bot], axis=0)       # (tH+2, W+2, Cin)

    # im2col: concat the 9 shifted views on the channel (lane) axis, then a single
    # (tH, W, 9*Cin) -> (tH*W, 9*Cin) reshape.  Channel-block order is (dy, dx, c),
    # matching the (3,3,Cin,Cmid)->(9*Cin,Cmid) weight reshape in the wrapper.
    taps = [xp[dy:dy + th, dx:dx + w, :] for dy in range(3) for dx in range(3)]
    patches = jnp.concatenate(taps, axis=-1).reshape(th * w, 9 * cin)

    # One MXU matmul with K = 9*Cin, f32 accumulation.
    y = jnp.dot(patches, w1_ref[...], preferred_element_type=jnp.float32)
    y = jnp.maximum(y + bias_ref[...], 0.0)              # folded BN + ReLU

    # conv1x1 as VPU multiply + sublane reduce on the transposed activations,
    # producing the lane-dense (1, tH*W) output row directly.
    out_row = jnp.sum(y.T * w2_ref[...], axis=0, keepdims=True) + b2_ref[0]
    o_ref[0, 0] = out_row.astype(o_ref.dtype)


def _pick_tile_h(H, W, cin, *, im2col_budget_bytes=8 << 20, target_lanes=1024):
    """Pick a divisor of H: lane-dense output rows (>=128 lanes) near target_lanes,
    subject to the im2col patch fitting a small VMEM budget."""
    cap = max(1, im2col_budget_bytes // max(1, W * 9 * cin * 4))
    divisors = [t for t in range(1, H + 1) if H % t == 0 and t <= cap]
    dense = [t for t in divisors if t * W >= 128]
    if dense:
        return min(dense, key=lambda t: abs(t * W - target_lanes))
    return max(divisors)


def matting_head_forward(x_nchw, params, tile_h=None):
    """x_nchw: (B, Cin, H, W) float32 -> (B, 1, H, W) float32."""
    w1, b1, gamma, beta, running_mean, running_var, w2, b2 = (
        params["w1"], params["b1"], params["gamma"], params["beta"],
        params["running_mean"], params["running_var"], params["w2"], params["b2"])
    eps = 1e-5

    B, Cin, H, W = x_nchw.shape
    Cmid = w1.shape[-1]

    if tile_h is None:
        tile_h = _pick_tile_h(H, W, Cin)
    if H % tile_h != 0:  # fall back to the largest divisor of H not above tile_h
        tile_h = max(t for t in range(1, tile_h + 1) if H % t == 0)
    n_h = H // tile_h
    th = tile_h  # closure constant for the index maps

    # NCHW -> NHWC (channels on the lane axis); pad only W by 1 (conv3x3, pad=1).
    # The H halo is read straight from HBM via the halo BlockSpecs below.
    # TODO(synk): transpose+pad is still one extra HBM pass over the input; a fully
    # fused version would DMA directly from the NCHW layout.
    x_nhwc = jnp.transpose(x_nchw, (0, 2, 3, 1))
    x_padw = jnp.pad(x_nhwc, ((0, 0), (0, 0), (1, 1), (0, 0)))   # (B, H, W+2, Cin)

    # Fold BatchNorm (inference) into the conv3x3 weight and bias.
    s = gamma / jnp.sqrt(running_var + eps)                       # (Cmid,)
    w1_folded = (w1 * s[None, None, None, :]).reshape(9 * Cin, Cmid)
    bias_fused = ((b1 - running_mean) * s + beta).reshape(1, Cmid)
    w2_col = w2.reshape(Cmid, 1)
    b2_s = b2.reshape(1)

    out = pl.pallas_call(
        _matting_head_kernel,
        out_shape=jax.ShapeDtypeStruct((B, n_h, 1, tile_h * W), jnp.float32),
        grid_spec=pltpu.PrefetchScalarGridSpec(
            num_scalar_prefetch=0,
            grid=(B, n_h),
            in_specs=[
                # top halo row (row t*th - 1, clamped; zeroed in-kernel at t == 0)
                pl.BlockSpec((1, 1, W + 2, Cin),
                             lambda b, t: (b, jnp.maximum(t * th - 1, 0), 0, 0)),
                # body rows [t*th, (t+1)*th)
                pl.BlockSpec((1, th, W + 2, Cin), lambda b, t: (b, t, 0, 0)),
                # bottom halo row ((t+1)*th, clamped; zeroed in-kernel on last tile)
                pl.BlockSpec((1, 1, W + 2, Cin),
                             lambda b, t: (b, jnp.minimum((t + 1) * th, H - 1), 0, 0)),
                pl.BlockSpec((9 * Cin, Cmid), lambda b, t: (0, 0)),
                pl.BlockSpec((1, Cmid), lambda b, t: (0, 0)),
                pl.BlockSpec((Cmid, 1), lambda b, t: (0, 0)),
                pl.BlockSpec(memory_space=pltpu.MemorySpace.SMEM),
            ],
            out_specs=pl.BlockSpec((1, 1, 1, tile_h * W),
                                   lambda b, t: (b, t, 0, 0)),
        ),
        compiler_params=pltpu.CompilerParams(
            dimension_semantics=("parallel", "parallel"),
        ),
    )(x_padw, x_padw, x_padw, w1_folded, bias_fused, w2_col, b2_s)

    # (B, n_h, 1, tile_h*W) rows are already in (b, y, x) order -> NCHW directly.
    return out.reshape(B, 1, H, W)


def init_params(key, in_chans=32, mid_chans=16):
    k1, k2, k3, k4 = jax.random.split(key, 4)
    # conv3x3: HWIO layout (3, 3, in, mid);  conv1x1: (mid, 1)
    w1 = 0.1 * jax.random.normal(k1, (3, 3, in_chans, mid_chans), jnp.float32)
    b1 = 0.1 * jax.random.normal(k2, (mid_chans,), jnp.float32)
    w2 = 0.1 * jax.random.normal(k3, (mid_chans, 1), jnp.float32)
    b2 = 0.1 * jax.random.normal(k4, (1,), jnp.float32)
    # BatchNorm params: PyTorch defaults gamma=1, beta=0, mean=0, var=1.
    gamma = jnp.ones((mid_chans,), jnp.float32)
    beta = jnp.zeros((mid_chans,), jnp.float32)
    running_mean = jnp.zeros((mid_chans,), jnp.float32)
    running_var = jnp.ones((mid_chans,), jnp.float32)
    return dict(w1=w1, b1=b1, gamma=gamma, beta=beta,
                running_mean=running_mean, running_var=running_var,
                w2=w2, b2=b2)


def _reference_forward(x_nchw, params):
    """Pure-JAX reference (same eval-mode BN semantics) for a sanity check."""
    eps = 1e-5
    x = jnp.transpose(x_nchw, (0, 2, 3, 1))           # NHWC
    y = jax.lax.conv_general_dilated(
        x, params["w1"], window_strides=(1, 1), padding="SAME",
        dimension_numbers=("NHWC", "HWIO", "NHWC"))
    y = y + params["b1"]
    scale = params["gamma"] / jnp.sqrt(params["running_var"] + eps)
    y = (y - params["running_mean"]) * scale + params["beta"]
    y = jnp.maximum(y, 0.0)
    y = jnp.einsum("bhwc,co->bhwo", y, params["w2"]) + params["b2"]
    return jnp.transpose(y, (0, 3, 1, 2))             # NCHW


if __name__ == "__main__":
    key = jax.random.PRNGKey(0)
    pkey, xkey = jax.random.split(key)

    in_chans, mid_chans = 32, 16
    B, H, W = 2, 16, 16

    params = init_params(pkey, in_chans, mid_chans)
    x = jax.random.normal(xkey, (B, in_chans, H, W), jnp.float32)

    # tile_h=8 -> 2 H-tiles per image, grid (B, 2) = 4 parallel steps, and a
    # lane-dense output row of tile_h*W = 128 elements per step.
    out = matting_head_forward(x, params, tile_h=8)
    out = jax.block_until_ready(out)

    ref = _reference_forward(x, params)
    assert out.shape == (B, 1, H, W), out.shape
    assert jnp.allclose(out, ref, atol=2e-4, rtol=2e-4), \
        float(jnp.max(jnp.abs(out - ref)))

    print("KERNEL_OK")
</pallas_src>

<mosaic_0001>
module attributes {stable_mosaic.version = 11 : i64} {
  func.func @_matting_head_kernel(%arg0: i32, %arg1: i32, %arg2: memref<1x1x18x32xf32, #tpu.memory_space<vmem>>, %arg3: memref<1x8x18x32xf32, #tpu.memory_space<vmem>>, %arg4: memref<1x1x18x32xf32, #tpu.memory_space<vmem>>, %arg5: memref<288x16xf32, #tpu.memory_space<vmem>>, %arg6: memref<1x16xf32, #tpu.memory_space<vmem>>, %arg7: memref<16x1xf32, #tpu.memory_space<vmem>>, %arg8: memref<1xf32, #tpu.memory_space<smem>>, %arg9: memref<1x1x1x128xf32, #tpu.memory_space<vmem>>) attributes {dimension_semantics = [#tpu.dimension_semantics<parallel>, #tpu.dimension_semantics<parallel>], iteration_bounds = array<i64: 2, 2>, scalar_prefetch = 0 : i64, scratch_operands = 0 : i64, tpu.core_type = #tpu.core_type<tc>, window_params = [{transform_indices = @transform_0, window_bounds = array<i64: 1, 1, 18, 32>}, {transform_indices = @transform_1, window_bounds = array<i64: 1, 8, 18, 32>}, {transform_indices = @transform_2, window_bounds = array<i64: 1, 1, 18, 32>}, {pipeline_mode = #tpu.pipeline_mode<synchronous>, transform_indices = @transform_3, window_bounds = array<i64: 288, 16>}, {pipeline_mode = #tpu.pipeline_mode<synchronous>, transform_indices = @transform_4, window_bounds = array<i64: 1, 16>}, {pipeline_mode = #tpu.pipeline_mode<synchronous>, transform_indices = @transform_5, window_bounds = array<i64: 16, 1>}, {transform_indices = @transform_6, window_bounds = array<i64: 1>}, {transform_indices = @transform_7, window_bounds = array<i64: 1, 1, 1, 128>}]} {
    %c0 = arith.constant 0 : index
    %c0_0 = arith.constant 0 : index
    %c0_1 = arith.constant 0 : index
    %c0_2 = arith.constant 0 : index
    %0 = vector.load %arg3[%c0, %c0_0, %c0_1, %c0_2] : memref<1x8x18x32xf32, #tpu.memory_space<vmem>>, vector<1x8x18x32xf32>
    %1 = vector.shape_cast %0 : vector<1x8x18x32xf32> to vector<8x18x32xf32>
    %c0_i32 = arith.constant 0 : i32
    %2 = arith.cmpi eq, %arg1, %c0_i32 : i32
    %c0_3 = arith.constant 0 : index
    %c0_4 = arith.constant 0 : index
    %c0_5 = arith.constant 0 : index
    %c0_6 = arith.constant 0 : index
    %3 = vector.load %arg2[%c0_3, %c0_4, %c0_5, %c0_6] : memref<1x1x18x32xf32, #tpu.memory_space<vmem>>, vector<1x1x18x32xf32>
    %4 = vector.shape_cast %3 : vector<1x1x18x32xf32> to vector<1x18x32xf32>
    %cst = arith.constant 0.000000e+00 : f32
    %5 = vector.broadcast %cst : f32 to vector<1x18x32xf32>
    %6 = arith.select %2, %5, %4 : vector<1x18x32xf32>
    %c1_i32 = arith.constant 1 : i32
    %7 = arith.cmpi eq, %arg1, %c1_i32 : i32
    %c0_7 = arith.constant 0 : index
    %c0_8 = arith.constant 0 : index
    %c0_9 = arith.constant 0 : index
    %c0_10 = arith.constant 0 : index
    %8 = vector.load %arg4[%c0_7, %c0_8, %c0_9, %c0_10] : memref<1x1x18x32xf32, #tpu.memory_space<vmem>>, vector<1x1x18x32xf32>
    %9 = vector.shape_cast %8 : vector<1x1x18x32xf32> to vector<1x18x32xf32>
    %cst_11 = arith.constant 0.000000e+00 : f32
    %10 = vector.broadcast %cst_11 : f32 to vector<1x18x32xf32>
    %11 = arith.select %7, %10, %9 : vector<1x18x32xf32>
    %12 = tpu.concatenate %6, %1, %11 in 0 : vector<1x18x32xf32>, vector<8x18x32xf32>, vector<1x18x32xf32> -> vector<10x18x32xf32>
    %13 = vector.extract_strided_slice %12 {offsets = [0, 0, 0], sizes = [8, 16, 32], strides = [1, 1, 1]} : vector<10x18x32xf32> to vector<8x16x32xf32>
    %14 = vector.extract_strided_slice %12 {offsets = [0, 1, 0], sizes = [8, 16, 32], strides = [1, 1, 1]} : vector<10x18x32xf32> to vector<8x16x32xf32>
    %15 = vector.extract_strided_slice %12 {offsets = [0, 2, 0], sizes = [8, 16, 32], strides = [1, 1, 1]} : vector<10x18x32xf32> to vector<8x16x32xf32>
    %16 = vector.extract_strided_slice %12 {offsets = [1, 0, 0], sizes = [8, 16, 32], strides = [1, 1, 1]} : vector<10x18x32xf32> to vector<8x16x32xf32>
    %17 = vector.extract_strided_slice %12 {offsets = [1, 1, 0], sizes = [8, 16, 32], strides = [1, 1, 1]} : vector<10x18x32xf32> to vector<8x16x32xf32>
    %18 = vector.extract_strided_slice %12 {offsets = [1, 2, 0], sizes = [8, 16, 32], strides = [1, 1, 1]} : vector<10x18x32xf32> to vector<8x16x32xf32>
    %19 = vector.extract_strided_slice %12 {offsets = [2, 0, 0], sizes = [8, 16, 32], strides = [1, 1, 1]} : vector<10x18x32xf32> to vector<8x16x32xf32>
    %20 = vector.extract_strided_slice %12 {offsets = [2, 1, 0], sizes = [8, 16, 32], strides = [1, 1, 1]} : vector<10x18x32xf32> to vector<8x16x32xf32>
    %21 = vector.extract_strided_slice %12 {offsets = [2, 2, 0], sizes = [8, 16, 32], strides = [1, 1, 1]} : vector<10x18x32xf32> to vector<8x16x32xf32>
    %22 = tpu.concatenate %13, %14, %15, %16, %17, %18, %19, %20, %21 in 2 : vector<8x16x32xf32>, vector<8x16x32xf32>, vector<8x16x32xf32>, vector<8x16x32xf32>, vector<8x16x32xf32>, vector<8x16x32xf32>, vector<8x16x32xf32>, vector<8x16x32xf32>, vector<8x16x32xf32> -> vector<8x16x288xf32>
    %23 = vector.shape_cast %22 : vector<8x16x288xf32> to vector<128x288xf32>
    %c0_12 = arith.constant 0 : index
    %c0_13 = arith.constant 0 : index
    %24 = vector.load %arg5[%c0_12, %c0_13] : memref<288x16xf32, #tpu.memory_space<vmem>>, vector<288x16xf32>
    %cst_14 = arith.constant dense<0.000000e+00> : vector<128x16xf32>
    %25 = tpu.matmul %23, %24, %cst_14 {dimension_numbers = #tpu.dot_dimension_numbers<[1], [0], [0], [1], [0, 0, 1, 1], [], []>} : vector<128x288xf32>, vector<288x16xf32>, vector<128x16xf32> -> vector<128x16xf32>
    %c0_15 = arith.constant 0 : index
    %c0_16 = arith.constant 0 : index
    %26 = vector.load %arg6[%c0_15, %c0_16] : memref<1x16xf32, #tpu.memory_space<vmem>>, vector<1x16xf32>
    %27 = vector.broadcast %26 : vector<1x16xf32> to vector<128x16xf32>
    %28 = arith.addf %25, %27 : vector<128x16xf32>
    %cst_17 = arith.constant 0.000000e+00 : f32
    %29 = vector.broadcast %cst_17 : f32 to vector<128x16xf32>
    %30 = arith.maximumf %28, %29 : vector<128x16xf32>
    %31 = tpu.transpose %30, [1, 0] : vector<128x16xf32> -> vector<16x128xf32>
    %c0_18 = arith.constant 0 : index
    %c0_19 = arith.constant 0 : index
    %32 = vector.load %arg7[%c0_18, %c0_19] : memref<16x1xf32, #tpu.memory_space<vmem>>, vector<16x1xf32>
    %33 = vector.broadcast %32 : vector<16x1xf32> to vector<16x128xf32>
    %34 = arith.mulf %31, %33 : vector<16x128xf32>
    %cst_20 = arith.constant dense<0.000000e+00> : vector<128xf32>
    %35 = vector.multi_reduction <add>, %34, %cst_20 [0] : vector<16x128xf32> to vector<128xf32>
    %36 = vector.shape_cast %35 : vector<128xf32> to vector<1x128xf32>
    %c0_21 = arith.constant 0 : index
    %37 = memref.load %arg8[%c0_21] : memref<1xf32, #tpu.memory_space<smem>>
    %38 = vector.broadcast %37 : f32 to vector<1x128xf32>
    %39 = arith.addf %36, %38 : vector<1x128xf32>
    %c0_22 = arith.constant 0 : index
    %c0_23 = arith.constant 0 : index
    %c0_24 = arith.constant 0 : index
    %c0_25 = arith.constant 0 : index
    %40 = vector.load %arg9[%c0_22, %c0_23, %c0_24, %c0_25] : memref<1x1x1x128xf32, #tpu.memory_space<vmem>>, vector<1x1x1x128xf32>
    %41 = vector.shape_cast %40 : vector<1x1x1x128xf32> to vector<1x128xf32>
    %42 = vector.shape_cast %39 : vector<1x128xf32> to vector<1x1x1x128xf32>
    tpu.vector_store %arg9[%c0_22, %c0_23, %c0_24, %c0_25], %42 {strides = array<i32>} : memref<1x1x1x128xf32, #tpu.memory_space<vmem>>, vector<1x1x1x128xf32>,
    return
  }
  func.func @transform_0(%arg0: i32, %arg1: i32) -> (i32, i32, i32, i32) {
    %c8_i32 = arith.constant 8 : i32
    %0 = arith.muli %arg1, %c8_i32 : i32
    %c1_i32 = arith.constant 1 : i32
    %1 = arith.subi %0, %c1_i32 : i32
    %c0_i32 = arith.constant 0 : i32
    %2 = arith.maxsi %1, %c0_i32 : i32
    %c0_i32_0 = arith.constant 0 : i32
    %c0_i32_1 = arith.constant 0 : i32
    %c0_i32_2 = arith.constant 0 : i32
    return %arg0, %2, %c0_i32_0, %c0_i32_1 : i32, i32, i32, i32
  }
  func.func @transform_1(%arg0: i32, %arg1: i32) -> (i32, i32, i32, i32) {
    %c0_i32 = arith.constant 0 : i32
    %c0_i32_0 = arith.constant 0 : i32
    %c0_i32_1 = arith.constant 0 : i32
    return %arg0, %arg1, %c0_i32, %c0_i32_0 : i32, i32, i32, i32
  }
  func.func @transform_2(%arg0: i32, %arg1: i32) -> (i32, i32, i32, i32) {
    %c1_i32 = arith.constant 1 : i32
    %0 = arith.addi %arg1, %c1_i32 : i32
    %c8_i32 = arith.constant 8 : i32
    %1 = arith.muli %0, %c8_i32 : i32
    %c15_i32 = arith.constant 15 : i32
    %2 = arith.minsi %1, %c15_i32 : i32
    %c0_i32 = arith.constant 0 : i32
    %c0_i32_0 = arith.constant 0 : i32
    %c0_i32_1 = arith.constant 0 : i32
    return %arg0, %2, %c0_i32, %c0_i32_0 : i32, i32, i32, i32
  }
  func.func @transform_3(%arg0: i32, %arg1: i32) -> (i32, i32) {
    %c0_i32 = arith.constant 0 : i32
    %c0_i32_0 = arith.constant 0 : i32
    %c0_i32_1 = arith.constant 0 : i32
    return %c0_i32, %c0_i32_0 : i32, i32
  }
  func.func @transform_4(%arg0: i32, %arg1: i32) -> (i32, i32) {
    %c0_i32 = arith.constant 0 : i32
    %c0_i32_0 = arith.constant 0 : i32
    %c0_i32_1 = arith.constant 0 : i32
    return %c0_i32, %c0_i32_0 : i32, i32
  }
  func.func @transform_5(%arg0: i32, %arg1: i32) -> (i32, i32) {
    %c0_i32 = arith.constant 0 : i32
    %c0_i32_0 = arith.constant 0 : i32
    %c0_i32_1 = arith.constant 0 : i32
    return %c0_i32, %c0_i32_0 : i32, i32
  }
  func.func @transform_6(%arg0: i32, %arg1: i32) -> i32 {
    %c0_i32 = arith.constant 0 : i32
    %c0_i32_0 = arith.constant 0 : i32
    return %c0_i32 : i32
  }
  func.func @transform_7(%arg0: i32, %arg1: i32) -> (i32, i32, i32, i32) {
    %c0_i32 = arith.constant 0 : i32
    %c0_i32_0 = arith.constant 0 : i32
    %c0_i32_1 = arith.constant 0 : i32
    return %arg0, %arg1, %c0_i32, %c0_i32_0 : i32, i32, i32, i32
  }
}

</mosaic_0001>

<llo_original>
// kernel: tpu_custom_call.1
$region0: #{tpu_custom_call.1}
  #allocation0 [shape = 'u32[]', space=smem, size = 0x4, offset = 0x4, fixed_abs, tag = 'smem constant byte address 0x4 - core index']
  #allocation1 [shape = 'u32[144,128]{1,0:T(1,128)}', space=vmem, size = 0x12000, scoped, tag = 'internal scratch']
  #allocation2 [shape = 'f32[1]{0:T(128)S(6)}', space=smem, size = 0x200, scoped, tag = 'scoped memory for tpu_custom_call.1']
  %s0 = inlined_call_operand.vmem [shape: f32[2,16,18,32], index: 0, kind: input, shape index: {}]
  %s1 = inlined_call_operand.vmem [shape: f32[2,16,18,32], index: 1, kind: input, shape index: {}]
  %s2 = inlined_call_operand.vmem [shape: f32[2,16,18,32], index: 2, kind: input, shape index: {}]
  %s3 = inlined_call_operand.vmem [shape: f32[288,16], index: 3, kind: input, shape index: {}]
  %s4 = inlined_call_operand.vmem [shape: f32[1,16], index: 4, kind: input, shape index: {}]
  %s5 = inlined_call_operand.vmem [shape: f32[16,1], index: 5, kind: input, shape index: {}]
  %s6 = inlined_call_operand.<no memory space> [shape: f32[1], index: 6, kind: input, shape index: {}]
  %s7 = inlined_call_operand.hbm [shape: f32[2,2,1,128], index: 7, kind: output, shape index: {}]
  %s8 = sld [smem:[#allocation0]]
  $region61: #{tpu_custom_call.1} parent=0
    _
  %s10 = ssub.s32 1, %s8
  %s11 = scalar_select 0, %s10, %s8
  %12 = sst [smem:[#allocation2]] %s6
  $region1: #{tpu_custom_call.1} parent=0
    #allocation3 [shape = 'u8[1024]{0}', space=vmem, size = 0x400, scoped, tag = 'output window, operand 0']
    #allocation4 [shape = 's32[2]{0}', space=sflag, size = 0x8, scoped, tag = 'scoped memory for tpu_custom_call.1']
    %13 = vsyncpa [#allocation4], 0
    %s14 = scalar_lea.sflag [#allocation4], 1
    %15 = vsyncpa %s14, 0
    loop: start=0, step=1, limit=6
    $region2: #{tpu_custom_call.1} parent=1 // loop_pre_header
      _
    $region3: #{tpu_custom_call.1} parent=1 // loop_header
      %s17 = sphi 0, %s21
      %p18 = scmp.ge.s32.totalorder %s17, 6
      %s24 = sphi 0, %s36
      %s25 = sphi 0, %s32
      %s26 = sphi 0, %s24
      %s27 = sphi 0, %s25
      %s28 = sphi 0, %s26
      %s29 = sphi 0, %s27
      %s49 = sphi 0, %s51
      %s52 = sphi 0, %s49
      %s53 = sphi 0, %s52
      %s69 = sphi 0, %s53
      %s77 = sphi 0, %s79
      %s80 = sphi 0, %s77
      %s81 = sphi 0, %s80
      %s97 = sphi 0, %s81
      %s113 = sphi 0, %s115
      %s116 = sphi 0, %s113
      %s117 = sphi 0, %s116
      %s133 = sphi 0, %s117
      %s137 = sphi 0, %s137
      %s139 = sphi 0, %s137
      %s140 = sphi 0, %s139
      %s154 = sphi 0, %s140
      %s158 = sphi 0, %s158
      %s160 = sphi 0, %s158
      %s161 = sphi 0, %s160
      %s175 = sphi 0, %s161
      %s179 = sphi 0, %s179
      %s181 = sphi 0, %s179
      %s182 = sphi 0, %s181
      %s196 = sphi 0, %s182
      %s200 = sphi 0, %s200
      %s202 = sphi 0, %s200
      %s203 = sphi 0, %s202
      %s217 = sphi 0, %s203
      %s225 = sphi 0, %s227
      %s228 = sphi 0, %s225
      %s229 = sphi 0, %s228
      %s245 = sphi 0, %s229
    $region4: #{tpu_custom_call.1} parent=1 // loop_header_branch
      %20 = sbr.rel (%p18) target = $region8
    $region5: #{tpu_custom_call.1} parent=1 // loop_body
      %s22 = ssub.s32 %s17, 1
      %s23 = ssub.s32 %s17, 2
      %s30 = sadd.s32 1, %s25
      %p31 = scmp.ge.s32.totalorder %s30, 2
      %s32 = scalar_select %p31, 0, %s30
      %s33 = sadd.s32 1, %s24
      %s34 = scalar_select %p31, %s33, %s24
      %p35 = scmp.ge.s32.totalorder %s34, 2
      %s36 = scalar_select %p35, 0, %s34
      %s37 = smul.u32 %s25, 8
      %s38 = ssub.s32 %s37, 1
      %p39 = scmp.gt.s32.totalorder %s38, 0
      %s40 = scalar_select %p39, %s38, 0
      %s41 = smul.u32 %s32, 8
      %s42 = ssub.s32 %s41, 1
      %p43 = scmp.gt.s32.totalorder %s42, 0
      %s44 = scalar_select %p43, %s42, 0
      %s45 = ssub.s32 %s24, %s36
      %s46 = ssub.s32 %s40, %s44
      %s47 = sor.u32 %s45, %s46
      %p48 = scmp.eq.s32.totalorder %s47, 0
      %s50 = sadd.s32 %s49, 1
      %s51 = scalar_select %p48, %s49, %s50
      %p54 = pneg %p48
      %p55 = scmp.eq.s32.totalorder %s17, 3
      %p56 = por %p54, %p55
      %p57 = scmp.ne.s32.totalorder %s49, %s52
      %p58 = scmp.eq.s32.totalorder %s17, 0
      %p59 = por %p57, %p58
      %p60 = scmp.ne.s32.totalorder %s49, %s52
      %p61 = scmp.eq.s32.totalorder %s22, 3
      %p62 = por %p60, %p61
      %p63 = scmp.ne.s32.totalorder %s52, %s53
      %p64 = scmp.eq.s32.totalorder %s22, 0
      %p65 = por %p63, %p64
      %p66 = scmp.ne.s32.totalorder %s52, %s53
      %p67 = scmp.eq.s32.totalorder %s23, 3
      %p68 = por %p66, %p67
      %p70 = scmp.ne.s32.totalorder %s53, %s69
      %p71 = scmp.eq.s32.totalorder %s23, 0
      %p72 = por %p70, %p71
      %s73 = ssub.s32 %s24, %s36
      %s74 = ssub.s32 %s25, %s32
      %s75 = sor.u32 %s73, %s74
      %p76 = scmp.eq.s32.totalorder %s75, 0
      %s78 = sadd.s32 %s77, 1
      %s79 = scalar_select %p76, %s77, %s78
      %p82 = pneg %p76
      %p83 = scmp.eq.s32.totalorder %s17, 3
      %p84 = por %p82, %p83
      %p85 = scmp.ne.s32.totalorder %s77, %s80
      %p86 = scmp.eq.s32.totalorder %s17, 0
      %p87 = por %p85, %p86
      %p88 = scmp.ne.s32.totalorder %s77, %s80
      %p89 = scmp.eq.s32.totalorder %s22, 3
      %p90 = por %p88, %p89
      %p91 = scmp.ne.s32.totalorder %s80, %s81
      %p92 = scmp.eq.s32.totalorder %s22, 0
      %p93 = por %p91, %p92
      %p94 = scmp.ne.s32.totalorder %s80, %s81
      %p95 = scmp.eq.s32.totalorder %s23, 3
      %p96 = por %p94, %p95
      %p98 = scmp.ne.s32.totalorder %s81, %s97
      %p99 = scmp.eq.s32.totalorder %s23, 0
      %p100 = por %p98, %p99
      %s101 = sadd.s32 %s25, 1
      %s102 = smul.u32 %s101, 8
      %p103 = scmp.lt.s32.totalorder %s102, 15
      %s104 = scalar_select %p103, %s102, 15
      %s105 = sadd.s32 %s32, 1
      %s106 = smul.u32 %s105, 8
      %p107 = scmp.lt.s32.totalorder %s106, 15
      %s108 = scalar_select %p107, %s106, 15
      %s109 = ssub.s32 %s24, %s36
      %s110 = ssub.s32 %s104, %s108
      %s111 = sor.u32 %s109, %s110
      %p112 = scmp.eq.s32.totalorder %s111, 0
      %s114 = sadd.s32 %s113, 1
      %s115 = scalar_select %p112, %s113, %s114
      %p118 = pneg %p112
      %p119 = scmp.eq.s32.totalorder %s17, 3
      %p120 = por %p118, %p119
      %p121 = scmp.ne.s32.totalorder %s113, %s116
      %p122 = scmp.eq.s32.totalorder %s17, 0
      %p123 = por %p121, %p122
      %p124 = scmp.ne.s32.totalorder %s113, %s116
      %p125 = scmp.eq.s32.totalorder %s22, 3
      %p126 = por %p124, %p125
      %p127 = scmp.ne.s32.totalorder %s116, %s117
      %p128 = scmp.eq.s32.totalorder %s22, 0
      %p129 = por %p127, %p128
      %p130 = scmp.ne.s32.totalorder %s116, %s117
      %p131 = scmp.eq.s32.totalorder %s23, 3
      %p132 = por %p130, %p131
      %p134 = scmp.ne.s32.totalorder %s117, %s133
      %p135 = scmp.eq.s32.totalorder %s23, 0
      %p136 = por %p134, %p135
      %s138 = sadd.s32 %s137, 1
      %p141 = scmp.eq.s32.totalorder %s17, 3
      %p142 = scmp.ne.s32.totalorder %s137, %s139
      %p143 = scmp.eq.s32.totalorder %s17, 0
      %p144 = por %p142, %p143
      %p145 = scmp.ne.s32.totalorder %s137, %s139
      %p146 = scmp.eq.s32.totalorder %s22, 3
      %p147 = por %p145, %p146
      %p148 = scmp.ne.s32.totalorder %s139, %s140
      %p149 = scmp.eq.s32.totalorder %s22, 0
      %p150 = por %p148, %p149
      %p151 = scmp.ne.s32.totalorder %s139, %s140
      %p152 = scmp.eq.s32.totalorder %s23, 3
      %p153 = por %p151, %p152
      %p155 = scmp.ne.s32.totalorder %s140, %s154
      %p156 = scmp.eq.s32.totalorder %s23, 0
      %p157 = por %p155, %p156
      %s159 = sadd.s32 %s158, 1
      %p162 = scmp.eq.s32.totalorder %s17, 3
      %p163 = scmp.ne.s32.totalorder %s158, %s160
      %p164 = scmp.eq.s32.totalorder %s17, 0
      %p165 = por %p163, %p164
      %p166 = scmp.ne.s32.totalorder %s158, %s160
      %p167 = scmp.eq.s32.totalorder %s22, 3
      %p168 = por %p166, %p167
      %p169 = scmp.ne.s32.totalorder %s160, %s161
      %p170 = scmp.eq.s32.totalorder %s22, 0
      %p171 = por %p169, %p170
      %p172 = scmp.ne.s32.totalorder %s160, %s161
      %p173 = scmp.eq.s32.totalorder %s23, 3
      %p174 = por %p172, %p173
      %p176 = scmp.ne.s32.totalorder %s161, %s175
      %p177 = scmp.eq.s32.totalorder %s23, 0
      %p178 = por %p176, %p177
      %s180 = sadd.s32 %s179, 1
      %p183 = scmp.eq.s32.totalorder %s17, 3
      %p184 = scmp.ne.s32.totalorder %s179, %s181
      %p185 = scmp.eq.s32.totalorder %s17, 0
      %p186 = por %p184, %p185
      %p187 = scmp.ne.s32.totalorder %s179, %s181
      %p188 = scmp.eq.s32.totalorder %s22, 3
      %p189 = por %p187, %p188
      %p190 = scmp.ne.s32.totalorder %s181, %s182
      %p191 = scmp.eq.s32.totalorder %s22, 0
      %p192 = por %p190, %p191
      %p193 = scmp.ne.s32.totalorder %s181, %s182
      %p194 = scmp.eq.s32.totalorder %s23, 3
      %p195 = por %p193, %p194
      %p197 = scmp.ne.s32.totalorder %s182, %s196
      %p198 = scmp.eq.s32.totalorder %s23, 0
      %p199 = por %p197, %p198
      %s201 = sadd.s32 %s200, 1
      %p204 = scmp.eq.s32.totalorder %s17, 3
      %p205 = scmp.ne.s32.totalorder %s200, %s202
      %p206 = scmp.eq.s32.totalorder %s17, 0
      %p207 = por %p205, %p206
      %p208 = scmp.ne.s32.totalorder %s200, %s202
      %p209 = scmp.eq.s32.totalorder %s22, 3
      %p210 = por %p208, %p209
      %p211 = scmp.ne.s32.totalorder %s202, %s203
      %p212 = scmp.eq.s32.totalorder %s22, 0
      %p213 = por %p211, %p212
      %p214 = scmp.ne.s32.totalorder %s202, %s203
      %p215 = scmp.eq.s32.totalorder %s23, 3
      %p216 = por %p214, %p215
      %p218 = scmp.ne.s32.totalorder %s203, %s217
      %p219 = scmp.eq.s32.totalorder %s23, 0
      %p220 = por %p218, %p219
      %s221 = ssub.s32 %s24, %s36
      %s222 = ssub.s32 %s25, %s32
      %s223 = sor.u32 %s221, %s222
      %p224 = scmp.eq.s32.totalorder %s223, 0
      %s226 = sadd.s32 %s225, 1
      %s227 = scalar_select %p224, %s225, %s226
      %p230 = pneg %p224
      %p231 = scmp.eq.s32.totalorder %s17, 3
      %p232 = por %p230, %p231
      %p233 = scmp.ne.s32.totalorder %s225, %s228
      %p234 = scmp.eq.s32.totalorder %s17, 0
      %p235 = por %p233, %p234
      %p236 = scmp.ne.s32.totalorder %s225, %s228
      %p237 = scmp.eq.s32.totalorder %s22, 3
      %p238 = por %p236, %p237
      %p239 = scmp.ne.s32.totalorder %s228, %s229
      %p240 = scmp.eq.s32.totalorder %s22, 0
      %p241 = por %p239, %p240
      %p242 = scmp.ne.s32.totalorder %s228, %s229
      %p243 = scmp.eq.s32.totalorder %s23, 3
      %p244 = por %p242, %p243
      %p246 = scmp.ne.s32.totalorder %s229, %s245
      %p247 = scmp.eq.s32.totalorder %s23, 0
      %p248 = por %p246, %p247
      %p249 = scmp.le.s32.totalorder 1, %s17
      %p250 = scmp.lt.s32.totalorder %s17, 5
      %p251 = pnand %p249, %p250
      %p252 = pneg %p251
      // Predicated region
      $region9: #{tpu_custom_call.1} parent=5 // pred_check
        _
      $region10: #{tpu_custom_call.1} parent=5 // pred_check_branch
        %254 = sbr.rel (%p251) target = $region12
      $region11: #{tpu_custom_call.1} parent=5 // pred_region
        %s255 = ssub.s32 %s17, 1
        // Predicated region
        $region13: #{tpu_custom_call.1} parent=11 // pred_check
          %p256 = pneg %p150
        $region14: #{tpu_custom_call.1} parent=11 // pred_check_branch
          %258 = sbr.rel (%p256) target = $region16
        $region15: #{tpu_custom_call.1} parent=11 // pred_region
          _
        $region16: #{tpu_custom_call.1} parent=11 // pred_fallthru
          _
        // Predicated region
        $region17: #{tpu_custom_call.1} parent=11 // pred_check
          %p259 = pneg %p171
        $region18: #{tpu_custom_call.1} parent=11 // pred_check_branch
          %261 = sbr.rel (%p259) target = $region20
        $region19: #{tpu_custom_call.1} parent=11 // pred_region
          _
        $region20: #{tpu_custom_call.1} parent=11 // pred_fallthru
          _
        // Predicated region
        $region21: #{tpu_custom_call.1} parent=11 // pred_check
          %p262 = pneg %p192
        $region22: #{tpu_custom_call.1} parent=11 // pred_check_branch
          %264 = sbr.rel (%p262) target = $region24
        $region23: #{tpu_custom_call.1} parent=11 // pred_region
          _
        $region24: #{tpu_custom_call.1} parent=11 // pred_fallthru
          _
        // Predicated region
        $region25: #{tpu_custom_call.1} parent=11 // pred_check
          %p265 = pneg %p213
        $region26: #{tpu_custom_call.1} parent=11 // pred_check_branch
          %267 = sbr.rel (%p265) target = $region28
        $region27: #{tpu_custom_call.1} parent=11 // pred_region
          _
        $region28: #{tpu_custom_call.1} parent=11 // pred_fallthru
          _
      $region12: #{tpu_custom_call.1} parent=5 // pred_fallthru
        _
      %p268 = scmp.lt.s32.totalorder %s17, 4
      // Predicated region
      $region29: #{tpu_custom_call.1} parent=5 // pred_check
        %p269 = pneg %p268
      $region30: #{tpu_custom_call.1} parent=5 // pred_check_branch
        %271 = sbr.rel (%p269) target = $region32
      $region31: #{tpu_custom_call.1} parent=5 // pred_region
        // Predicated region
        $region33: #{tpu_custom_call.1} parent=31 // pred_check
          %p272 = pneg %p59
        $region34: #{tpu_custom_call.1} parent=31 // pred_check_branch
          %274 = sbr.rel (%p272) target = $region36
        $region35: #{tpu_custom_call.1} parent=31 // pred_region
          %s275 = smul.u32 %s25, 8
          %s276 = ssub.s32 %s275, 1
          %p277 = scmp.gt.s32.totalorder %s276, 0
          %s278 = scalar_select %p277, %s276, 0
          %p279 = scmp.lt.s32.totalorder %s24, 1
          %s280 = scalar_select %p279, %s24, 1
          %p281 = scmp.lt.s32.totalorder %s278, 15
          %s282 = scalar_select %p281, %s278, 15
          %s283 = smul.addr %s282, 3
          %s284 = smul.addr %s280, 48
          %s285 = sadd.s32 %s283, %s284
          %s286 = smul.addr %s285, 8
          %s287 = scalar_lea.vmem %s0, %s286
          %s288 = smul.u32 %s25, 8
          %s289 = ssub.s32 %s288, 1
          %p290 = scmp.gt.s32.totalorder %s289, 0
          %s291 = scalar_select %p290, %s289, 0
        $region36: #{tpu_custom_call.1} parent=31 // pred_fallthru
          _
        // Predicated region
        $region37: #{tpu_custom_call.1} parent=31 // pred_check
          %p292 = pneg %p87
        $region38: #{tpu_custom_call.1} parent=31 // pred_check_branch
          %294 = sbr.rel (%p292) target = $region40
        $region39: #{tpu_custom_call.1} parent=31 // pred_region
          %s295 = smul.u32 8, %s25
          %p296 = scmp.lt.s32.totalorder %s24, 1
          %s297 = scalar_select %p296, %s24, 1
          %p298 = scmp.lt.s32.totalorder %s295, 15
          %s299 = scalar_select %p298, %s295, 15
          %s300 = smul.addr %s299, 3
          %s301 = smul.addr %s297, 48
          %s302 = sadd.s32 %s300, %s301
          %s303 = smul.addr %s302, 8
          %s304 = scalar_lea.vmem %s1, %s303
          %s305 = smul.u32 8, %s25
        $region40: #{tpu_custom_call.1} parent=31 // pred_fallthru
          _
        // Predicated region
        $region41: #{tpu_custom_call.1} parent=31 // pred_check
          %p306 = pneg %p123
        $region42: #{tpu_custom_call.1} parent=31 // pred_check_branch
          %308 = sbr.rel (%p306) target = $region44
        $region43: #{tpu_custom_call.1} parent=31 // pred_region
          %s309 = sadd.s32 %s25, 1
          %s310 = smul.u32 %s309, 8
          %p311 = scmp.lt.s32.totalorder %s310, 15
          %s312 = scalar_select %p311, %s310, 15
          %p313 = scmp.lt.s32.totalorder %s24, 1
          %s314 = scalar_select %p313, %s24, 1
          %p315 = scmp.lt.s32.totalorder %s312, 15
          %s316 = scalar_select %p315, %s312, 15
          %s317 = smul.addr %s316, 3
          %s318 = smul.addr %s314, 48
          %s319 = sadd.s32 %s317, %s318
          %s320 = smul.addr %s319, 8
          %s321 = scalar_lea.vmem %s2, %s320
          %s322 = sadd.s32 %s25, 1
          %s323 = smul.u32 %s322, 8
          %p324 = scmp.lt.s32.totalorder %s323, 15
          %s325 = scalar_select %p324, %s323, 15
        $region44: #{tpu_custom_call.1} parent=31 // pred_fallthru
          _
      $region32: #{tpu_custom_call.1} parent=5 // pred_fallthru
        _
      %p326 = scmp.le.s32.totalorder 1, %s17
      %p327 = scmp.lt.s32.totalorder %s17, 5
      %p328 = pnand %p326, %p327
      %p329 = pneg %p328
      // Predicated region
      $region45: #{tpu_custom_call.1} parent=5 // pred_check
        _
      $region46: #{tpu_custom_call.1} parent=5 // pred_check_branch
        %331 = sbr.rel (%p328) target = $region48
      $region47: #{tpu_custom_call.1} parent=5 // pred_region
        %s332 = ssub.s32 %s17, 1
        %s333 = smul.u32 %s27, 8
        %s334 = ssub.s32 %s333, 1
        %p335 = scmp.gt.s32.totalorder %s334, 0
        %s336 = scalar_select %p335, %s334, 0
        %p337 = scmp.lt.s32.totalorder %s26, 1
        %s338 = scalar_select %p337, %s26, 1
        %p339 = scmp.lt.s32.totalorder %s336, 15
        %s340 = scalar_select %p339, %s336, 15
        %s341 = smul.addr %s340, 3
        %s342 = smul.addr %s338, 48
        %s343 = sadd.s32 %s341, %s342
        %s344 = smul.addr %s343, 8
        %s345 = scalar_lea.vmem %s0, %s344
        %p346 = pneg %p65
        %p347 = pneg %p62
        %s348 = smul.u32 8, %s27
        %p349 = scmp.lt.s32.totalorder %s26, 1
        %s350 = scalar_select %p349, %s26, 1
        %p351 = scmp.lt.s32.totalorder %s348, 15
        %s352 = scalar_select %p351, %s348, 15
        %s353 = smul.addr %s352, 3
        %s354 = smul.addr %s350, 48
        %s355 = sadd.s32 %s353, %s354
        %s356 = smul.addr %s355, 8
        %s357 = scalar_lea.vmem %s1, %s356
        %p358 = pneg %p93
        %p359 = pneg %p90
        %s360 = sadd.s32 %s27, 1
        %s361 = smul.u32 %s360, 8
        %p362 = scmp.lt.s32.totalorder %s361, 15
        %s363 = scalar_select %p362, %s361, 15
        %p364 = scmp.lt.s32.totalorder %s26, 1
        %s365 = scalar_select %p364, %s26, 1
        %p366 = scmp.lt.s32.totalorder %s363, 15
        %s367 = scalar_select %p366, %s363, 15
        %s368 = smul.addr %s367, 3
        %s369 = smul.addr %s365, 48
        %s370 = sadd.s32 %s368, %s369
        %s371 = smul.addr %s370, 8
        %s372 = scalar_lea.vmem %s2, %s371
        %p373 = pneg %p129
        %p374 = pneg %p126
        %p375 = pneg %p150
        %p376 = pneg %p147
        %p377 = pneg %p171
        %p378 = pneg %p168
        %p379 = pneg %p192
        %p380 = pneg %p189
        %p381 = pneg %p213
        %p382 = pneg %p210
        %p383 = pneg %p241
        %p384 = pneg %p238
        %s385 = sand.u32 %s228, 1
        %s386 = scalar_lea.sflag [#allocation4], %s385
        %s387 = sand.u32 %s228, 1
        %s388 = scalar_lea.vmem [#allocation3], %s387
        %s389 = smul.u32 %s27, 8
        %s390 = ssub.s32 %s389, 1
        %p391 = scmp.gt.s32.totalorder %s390, 0
        %s392 = scalar_select %p391, %s390, 0
        %p393 = scmp.lt.s32.totalorder %s26, 1
        %s394 = scalar_select %p393, %s26, 1
        %p395 = scmp.lt.s32.totalorder %s392, 15
        %s396 = scalar_select %p395, %s392, 15
        %s397 = smul.addr %s396, 3
        %s398 = smul.addr %s394, 48
        %s399 = sadd.s32 %s397, %s398
        %s400 = smul.addr %s399, 8
        %s401 = scalar_lea.vmem %s0, %s400
        %s402 = smul.u32 %s27, 8
        %s403 = ssub.s32 %s402, 1
        %p404 = scmp.gt.s32.totalorder %s403, 0
        %s405 = scalar_select %p404, %s403, 0
        %s406 = smul.u32 8, %s27
        %p407 = scmp.lt.s32.totalorder %s26, 1
        %s408 = scalar_select %p407, %s26, 1
        %p409 = scmp.lt.s32.totalorder %s406, 15
        %s410 = scalar_select %p409, %s406, 15
        %s411 = smul.addr %s410, 3
        %s412 = smul.addr %s408, 48
        %s413 = sadd.s32 %s411, %s412
        %s414 = smul.addr %s413, 8
        %s415 = scalar_lea.vmem %s1, %s414
        %s416 = smul.u32 8, %s27
        %s417 = sadd.s32 %s27, 1
        %s418 = smul.u32 %s417, 8
        %p419 = scmp.lt.s32.totalorder %s418, 15
        %s420 = scalar_select %p419, %s418, 15
        %p421 = scmp.lt.s32.totalorder %s26, 1
        %s422 = scalar_select %p421, %s26, 1
        %p423 = scmp.lt.s32.totalorder %s420, 15
        %s424 = scalar_select %p423, %s420, 15
        %s425 = smul.addr %s424, 3
        %s426 = smul.addr %s422, 48
        %s427 = sadd.s32 %s425, %s426
        %s428 = smul.addr %s427, 8
        %s429 = scalar_lea.vmem %s2, %s428
        %s430 = sadd.s32 %s27, 1
        %s431 = smul.u32 %s430, 8
        %p432 = scmp.lt.s32.totalorder %s431, 15
        %s433 = scalar_select %p432, %s431, 15
        %v434 = vld [vmem:[%s415] sm:$0xff]
        %v435 = vld [vmem:[%s415 + $0x8] sm:$0xff]
        %v436 = vld [vmem:[%s415 + $0x10] sm:$0x3]
        %v437 = vld [vmem:[%s415 + $0x18] sm:$0xff]
        %v438 = vld [vmem:[%s415 + $0x20] sm:$0xff]
        %v439 = vld [vmem:[%s415 + $0x28] sm:$0x3]
        %v440 = vld [vmem:[%s415 + $0x30] sm:$0xff]
        %v441 = vld [vmem:[%s415 + $0x38] sm:$0xff]
        %v442 = vld [vmem:[%s415 + $0x40] sm:$0x3]
        %v443 = vld [vmem:[%s415 + $0x48] sm:$0xff]
        %v444 = vld [vmem:[%s415 + $0x50] sm:$0xff]
        %v445 = vld [vmem:[%s415 + $0x58] sm:$0x3]
        %v446 = vld [vmem:[%s415 + $0x60] sm:$0xff]
        %v447 = vld [vmem:[%s415 + $0x68] sm:$0xff]
        %v448 = vld [vmem:[%s415 + $0x70] sm:$0x3]
        %v449 = vld [vmem:[%s415 + $0x78] sm:$0xff]
        %v450 = vld [vmem:[%s415 + $0x80] sm:$0xff]
        %v451 = vld [vmem:[%s415 + $0x88] sm:$0x3]
        %v452 = vld [vmem:[%s415 + $0x90] sm:$0xff]
        %v453 = vld [vmem:[%s415 + $0x98] sm:$0xff]
        %v454 = vld [vmem:[%s415 + $0xa0] sm:$0x3]
        %v455 = vld [vmem:[%s415 + $0xa8] sm:$0xff]
        %v456 = vld [vmem:[%s415 + $0xb0] sm:$0xff]
        %v457 = vld [vmem:[%s415 + $0xb8] sm:$0x3]
        %p458 = scmp.eq.s32.totalorder %s27, 0
        %v459 = vld [vmem:[%s401] sm:$0xff]
        %v460 = vld [vmem:[%s401 + $0x8] sm:$0xff]
        %v461 = vld [vmem:[%s401 + $0x10] sm:$0x3]
        %s462 = scalar_select %p458, 1, 0
        %v463 = vstv %s462
        %vm464 = vcmp.eq.s32.totalorder %v463, 1
        %v465 = vsel %vm464, 0.0, %v459
        %v466 = vsel %vm464, 0.0, %v460
        %v467 = vsel %vm464, 0.0, %v461
        %p468 = scmp.eq.s32.totalorder %s27, 1
        %v469 = vld [vmem:[%s429] sm:$0xff]
        %v470 = vld [vmem:[%s429 + $0x8] sm:$0xff]
        %v471 = vld [vmem:[%s429 + $0x10] sm:$0x3]
        %s472 = scalar_select %p468, 1, 0
        %v473 = vstv %s472
        %vm474 = vcmp.eq.s32.totalorder %v473, 1
        %v475 = vsel %vm474, 0.0, %v469
        %v476 = vsel %vm474, 0.0, %v470
        %v477 = vsel %vm474, 0.0, %v471
        %vm502 = vcmask 1046528
        %v503 = vrot.slane %v465, 1
        %v504 = vrot.slane %v466, 1
        %v505 = vsel %vm502, %v503, %v504
        %v506 = vrot.slane %v467, 1
        %v507 = vsel %vm502, %v504, %v506
        %v508 = vrot.slane %v434, 1
        %v509 = vrot.slane %v435, 1
        %v510 = vsel %vm502, %v508, %v509
        %v511 = vrot.slane %v436, 1
        %v512 = vsel %vm502, %v509, %v511
        %v513 = vrot.slane %v437, 1
        %v514 = vrot.slane %v438, 1
        %v515 = vsel %vm502, %v513, %v514
        %v516 = vrot.slane %v439, 1
        %v517 = vsel %vm502, %v514, %v516
        %v518 = vrot.slane %v440, 1
        %v519 = vrot.slane %v441, 1
        %v520 = vsel %vm502, %v518, %v519
        %v521 = vrot.slane %v442, 1
        %v522 = vsel %vm502, %v519, %v521
        %v523 = vrot.slane %v443, 1
        %v524 = vrot.slane %v444, 1
        %v525 = vsel %vm502, %v523, %v524
        %v526 = vrot.slane %v445, 1
        %v527 = vsel %vm502, %v524, %v526
        %v528 = vrot.slane %v446, 1
        %v529 = vrot.slane %v447, 1
        %v530 = vsel %vm502, %v528, %v529
        %v531 = vrot.slane %v448, 1
        %v532 = vsel %vm502, %v529, %v531
        %v533 = vrot.slane %v449, 1
        %v534 = vrot.slane %v450, 1
        %v535 = vsel %vm502, %v533, %v534
        %v536 = vrot.slane %v451, 1
        %v537 = vsel %vm502, %v534, %v536
        %v538 = vrot.slane %v452, 1
        %v539 = vrot.slane %v453, 1
        %v540 = vsel %vm502, %v538, %v539
        %v541 = vrot.slane %v454, 1
        %v542 = vsel %vm502, %v539, %v541
        %543 = vrot.lane.b32.xlu0 %v505, 32
        %v544 = vpop.permute.xlu0 %543
        %545 = vrot.lane.b32.xlu0 %v507, 32
        %v546 = vpop.permute.xlu0 %545
        %547 = vrot.lane.b32.xlu0 %v510, 32
        %v548 = vpop.permute.xlu0 %547
        %549 = vrot.lane.b32.xlu0 %v512, 32
        %v550 = vpop.permute.xlu0 %549
        %551 = vrot.lane.b32.xlu0 %v515, 32
        %v552 = vpop.permute.xlu0 %551
        %553 = vrot.lane.b32.xlu0 %v517, 32
        %v554 = vpop.permute.xlu0 %553
        %555 = vrot.lane.b32.xlu0 %v520, 32
        %v556 = vpop.permute.xlu0 %555
        %557 = vrot.lane.b32.xlu0 %v522, 32
        %v558 = vpop.permute.xlu0 %557
        %559 = vrot.lane.b32.xlu0 %v525, 32
        %v560 = vpop.permute.xlu0 %559
        %561 = vrot.lane.b32.xlu0 %v527, 32
        %v562 = vpop.permute.xlu0 %561
        %563 = vrot.lane.b32.xlu0 %v530, 32
        %v564 = vpop.permute.xlu0 %563
        %565 = vrot.lane.b32.xlu0 %v532, 32
        %v566 = vpop.permute.xlu0 %565
        %567 = vrot.lane.b32.xlu0 %v535, 32
        %v568 = vpop.permute.xlu0 %567
        %569 = vrot.lane.b32.xlu0 %v537, 32
        %v570 = vpop.permute.xlu0 %569
        %571 = vrot.lane.b32.xlu0 %v540, 32
        %v572 = vpop.permute.xlu0 %571
        %573 = vrot.lane.b32.xlu0 %v542, 32
        %v574 = vpop.permute.xlu0 %573
        %vm591 = vcmask 1045504
        %v592 = vrot.slane %v465, 2
        %v593 = vrot.slane %v466, 2
        %v594 = vsel %vm591, %v592, %v593
        %v595 = vrot.slane %v467, 2
        %v596 = vsel %vm591, %v593, %v595
        %v597 = vrot.slane %v434, 2
        %v598 = vrot.slane %v435, 2
        %v599 = vsel %vm591, %v597, %v598
        %v600 = vrot.slane %v436, 2
        %v601 = vsel %vm591, %v598, %v600
        %v602 = vrot.slane %v437, 2
        %v603 = vrot.slane %v438, 2
        %v604 = vsel %vm591, %v602, %v603
        %v605 = vrot.slane %v439, 2
        %v606 = vsel %vm591, %v603, %v605
        %v607 = vrot.slane %v440, 2
        %v608 = vrot.slane %v441, 2
        %v609 = vsel %vm591, %v607, %v608
        %v610 = vrot.slane %v442, 2
        %v611 = vsel %vm591, %v608, %v610
        %v612 = vrot.slane %v443, 2
        %v613 = vrot.slane %v444, 2
        %v614 = vsel %vm591, %v612, %v613
        %v615 = vrot.slane %v445, 2
        %v616 = vsel %vm591, %v613, %v615
        %v617 = vrot.slane %v446, 2
        %v618 = vrot.slane %v447, 2
        %v619 = vsel %vm591, %v617, %v618
        %v620 = vrot.slane %v448, 2
        %v621 = vsel %vm591, %v618, %v620
        %v622 = vrot.slane %v449, 2
        %v623 = vrot.slane %v450, 2
        %v624 = vsel %vm591, %v622, %v623
        %v625 = vrot.slane %v451, 2
        %v626 = vsel %vm591, %v623, %v625
        %v627 = vrot.slane %v452, 2
        %v628 = vrot.slane %v453, 2
        %v629 = vsel %vm591, %v627, %v628
        %v630 = vrot.slane %v454, 2
        %v631 = vsel %vm591, %v628, %v630
        %632 = vrot.lane.b32.xlu0 %v594, 64
        %v633 = vpop.permute.xlu0 %632
        %634 = vrot.lane.b32.xlu0 %v596, 64
        %v635 = vpop.permute.xlu0 %634
        %636 = vrot.lane.b32.xlu0 %v599, 64
        %v637 = vpop.permute.xlu0 %636
        %638 = vrot.lane.b32.xlu0 %v601, 64
        %v639 = vpop.permute.xlu0 %638
        %640 = vrot.lane.b32.xlu0 %v604, 64
        %v641 = vpop.permute.xlu0 %640
        %642 = vrot.lane.b32.xlu0 %v606, 64
        %v643 = vpop.permute.xlu0 %642
        %644 = vrot.lane.b32.xlu0 %v609, 64
        %v645 = vpop.permute.xlu0 %644
        %646 = vrot.lane.b32.xlu0 %v611, 64
        %v647 = vpop.permute.xlu0 %646
        %648 = vrot.lane.b32.xlu0 %v614, 64
        %v649 = vpop.permute.xlu0 %648
        %650 = vrot.lane.b32.xlu0 %v616, 64
        %v651 = vpop.permute.xlu0 %650
        %652 = vrot.lane.b32.xlu0 %v619, 64
        %v653 = vpop.permute.xlu0 %652
        %654 = vrot.lane.b32.xlu0 %v621, 64
        %v655 = vpop.permute.xlu0 %654
        %656 = vrot.lane.b32.xlu0 %v624, 64
        %v657 = vpop.permute.xlu0 %656
        %658 = vrot.lane.b32.xlu0 %v626, 64
        %v659 = vpop.permute.xlu0 %658
        %660 = vrot.lane.b32.xlu0 %v629, 64
        %v661 = vpop.permute.xlu0 %660
        %662 = vrot.lane.b32.xlu0 %v631, 64
        %v663 = vpop.permute.xlu0 %662
        %682 = vrot.lane.b32.xlu0 %v434, 96
        %v683 = vpop.permute.xlu0 %682
        %684 = vrot.lane.b32.xlu0 %v435, 96
        %v685 = vpop.permute.xlu0 %684
        %686 = vrot.lane.b32.xlu0 %v437, 96
        %v687 = vpop.permute.xlu0 %686
        %688 = vrot.lane.b32.xlu0 %v438, 96
        %v689 = vpop.permute.xlu0 %688
        %690 = vrot.lane.b32.xlu0 %v440, 96
        %v691 = vpop.permute.xlu0 %690
        %692 = vrot.lane.b32.xlu0 %v441, 96
        %v693 = vpop.permute.xlu0 %692
        %694 = vrot.lane.b32.xlu0 %v443, 96
        %v695 = vpop.permute.xlu0 %694
        %696 = vrot.lane.b32.xlu0 %v444, 96
        %v697 = vpop.permute.xlu0 %696
        %698 = vrot.lane.b32.xlu0 %v446, 96
        %v699 = vpop.permute.xlu0 %698
        %700 = vrot.lane.b32.xlu0 %v447, 96
        %v701 = vpop.permute.xlu0 %700
        %702 = vrot.lane.b32.xlu0 %v449, 96
        %v703 = vpop.permute.xlu0 %702
        %704 = vrot.lane.b32.xlu0 %v450, 96
        %v705 = vpop.permute.xlu0 %704
        %706 = vrot.lane.b32.xlu0 %v452, 96
        %v707 = vpop.permute.xlu0 %706
        %708 = vrot.lane.b32.xlu0 %v453, 96
        %v709 = vpop.permute.xlu0 %708
        %710 = vrot.lane.b32.xlu0 %v455, 96
        %v711 = vpop.permute.xlu0 %710
        %712 = vrot.lane.b32.xlu0 %v456, 96
        %v713 = vpop.permute.xlu0 %712
        %v731 = vrot.slane %v455, 1
        %v732 = vrot.slane %v456, 1
        %v733 = vsel %vm502, %v731, %v732
        %v734 = vrot.slane %v457, 1
        %v735 = vsel %vm502, %v732, %v734
        %v752 = vrot.slane %v455, 2
        %v753 = vrot.slane %v456, 2
        %v754 = vsel %vm591, %v752, %v753
        %v755 = vrot.slane %v457, 2
        %v756 = vsel %vm591, %v753, %v755
        %757 = vrot.lane.b32.xlu0 %v599, 32
        %v758 = vpop.permute.xlu0 %757
        %759 = vrot.lane.b32.xlu0 %v601, 32
        %v760 = vpop.permute.xlu0 %759
        %761 = vrot.lane.b32.xlu0 %v604, 32
        %v762 = vpop.permute.xlu0 %761
        %763 = vrot.lane.b32.xlu0 %v606, 32
        %v764 = vpop.permute.xlu0 %763
        %765 = vrot.lane.b32.xlu0 %v609, 32
        %v766 = vpop.permute.xlu0 %765
        %767 = vrot.lane.b32.xlu0 %v611, 32
        %v768 = vpop.permute.xlu0 %767
        %769 = vrot.lane.b32.xlu0 %v614, 32
        %v770 = vpop.permute.xlu0 %769
        %771 = vrot.lane.b32.xlu0 %v616, 32
        %v772 = vpop.permute.xlu0 %771
        %773 = vrot.lane.b32.xlu0 %v619, 32
        %v774 = vpop.permute.xlu0 %773
        %775 = vrot.lane.b32.xlu0 %v621, 32
        %v776 = vpop.permute.xlu0 %775
        %777 = vrot.lane.b32.xlu0 %v624, 32
        %v778 = vpop.permute.xlu0 %777
        %779 = vrot.lane.b32.xlu0 %v626, 32
        %v780 = vpop.permute.xlu0 %779
        %781 = vrot.lane.b32.xlu0 %v629, 32
        %v782 = vpop.permute.xlu0 %781
        %783 = vrot.lane.b32.xlu0 %v631, 32
        %v784 = vpop.permute.xlu0 %783
        %785 = vrot.lane.b32.xlu0 %v754, 32
        %v786 = vpop.permute.xlu0 %785
        %787 = vrot.lane.b32.xlu0 %v756, 32
        %v788 = vpop.permute.xlu0 %787
        %807 = vrot.lane.b32.xlu0 %v437, 64
        %v808 = vpop.permute.xlu0 %807
        %809 = vrot.lane.b32.xlu0 %v438, 64
        %v810 = vpop.permute.xlu0 %809
        %811 = vrot.lane.b32.xlu0 %v440, 64
        %v812 = vpop.permute.xlu0 %811
        %813 = vrot.lane.b32.xlu0 %v441, 64
        %v814 = vpop.permute.xlu0 %813
        %815 = vrot.lane.b32.xlu0 %v443, 64
        %v816 = vpop.permute.xlu0 %815
        %817 = vrot.lane.b32.xlu0 %v444, 64
        %v818 = vpop.permute.xlu0 %817
        %819 = vrot.lane.b32.xlu0 %v446, 64
        %v820 = vpop.permute.xlu0 %819
        %821 = vrot.lane.b32.xlu0 %v447, 64
        %v822 = vpop.permute.xlu0 %821
        %823 = vrot.lane.b32.xlu0 %v449, 64
        %v824 = vpop.permute.xlu0 %823
        %825 = vrot.lane.b32.xlu0 %v450, 64
        %v826 = vpop.permute.xlu0 %825
        %827 = vrot.lane.b32.xlu0 %v452, 64
        %v828 = vpop.permute.xlu0 %827
        %829 = vrot.lane.b32.xlu0 %v453, 64
        %v830 = vpop.permute.xlu0 %829
        %831 = vrot.lane.b32.xlu0 %v455, 64
        %v832 = vpop.permute.xlu0 %831
        %833 = vrot.lane.b32.xlu0 %v456, 64
        %v834 = vpop.permute.xlu0 %833
        %835 = vrot.lane.b32.xlu0 %v475, 64
        %v836 = vpop.permute.xlu0 %835
        %837 = vrot.lane.b32.xlu0 %v476, 64
        %v838 = vpop.permute.xlu0 %837
        %v856 = vrot.slane %v475, 1
        %v857 = vrot.slane %v476, 1
        %v858 = vsel %vm502, %v856, %v857
        %v859 = vrot.slane %v477, 1
        %v860 = vsel %vm502, %v857, %v859
        %861 = vrot.lane.b32.xlu0 %v515, 96
        %v862 = vpop.permute.xlu0 %861
        %863 = vrot.lane.b32.xlu0 %v517, 96
        %v864 = vpop.permute.xlu0 %863
        %865 = vrot.lane.b32.xlu0 %v520, 96
        %v866 = vpop.permute.xlu0 %865
        %867 = vrot.lane.b32.xlu0 %v522, 96
        %v868 = vpop.permute.xlu0 %867
        %869 = vrot.lane.b32.xlu0 %v525, 96
        %v870 = vpop.permute.xlu0 %869
        %871 = vrot.lane.b32.xlu0 %v527, 96
        %v872 = vpop.permute.xlu0 %871
        %873 = vrot.lane.b32.xlu0 %v530, 96
        %v874 = vpop.permute.xlu0 %873
        %875 = vrot.lane.b32.xlu0 %v532, 96
        %v876 = vpop.permute.xlu0 %875
        %877 = vrot.lane.b32.xlu0 %v535, 96
        %v878 = vpop.permute.xlu0 %877
        %879 = vrot.lane.b32.xlu0 %v537, 96
        %v880 = vpop.permute.xlu0 %879
        %881 = vrot.lane.b32.xlu0 %v540, 96
        %v882 = vpop.permute.xlu0 %881
        %883 = vrot.lane.b32.xlu0 %v542, 96
        %v884 = vpop.permute.xlu0 %883
        %885 = vrot.lane.b32.xlu0 %v733, 96
        %v886 = vpop.permute.xlu0 %885
        %887 = vrot.lane.b32.xlu0 %v735, 96
        %v888 = vpop.permute.xlu0 %887
        %889 = vrot.lane.b32.xlu0 %v858, 96
        %v890 = vpop.permute.xlu0 %889
        %891 = vrot.lane.b32.xlu0 %v860, 96
        %v892 = vpop.permute.xlu0 %891
        %v909 = vrot.slane %v475, 2
        %v910 = vrot.slane %v476, 2
        %v911 = vsel %vm591, %v909, %v910
        %v912 = vrot.slane %v477, 2
        %v913 = vsel %vm591, %v910, %v912
        %vm914 = vcmask 261120
        %v915 = vsel %vm914, %v465, %v544
        %v916 = vsel %vm914, %v466, %v546
        %v917 = vsel %vm914, %v434, %v548
        %v918 = vsel %vm914, %v435, %v550
        %v919 = vsel %vm914, %v437, %v552
        %v920 = vsel %vm914, %v438, %v554
        %v921 = vsel %vm914, %v440, %v556
        %v922 = vsel %vm914, %v441, %v558
        %v923 = vsel %vm914, %v443, %v560
        %v924 = vsel %vm914, %v444, %v562
        %v925 = vsel %vm914, %v446, %v564
        %v926 = vsel %vm914, %v447, %v566
        %v927 = vsel %vm914, %v449, %v568
        %v928 = vsel %vm914, %v450, %v570
        %v929 = vsel %vm914, %v452, %v572
        %v930 = vsel %vm914, %v453, %v574
        %vm931 = vcmask 523264
        %v932 = vsel %vm931, %v915, %v633
        %v933 = vsel %vm931, %v916, %v635
        %v934 = vsel %vm931, %v917, %v637
        %v935 = vsel %vm931, %v918, %v639
        %v936 = vsel %vm931, %v919, %v641
        %v937 = vsel %vm931, %v920, %v643
        %v938 = vsel %vm931, %v921, %v645
        %v939 = vsel %vm931, %v922, %v647
        %v940 = vsel %vm931, %v923, %v649
        %v941 = vsel %vm931, %v924, %v651
        %v942 = vsel %vm931, %v925, %v653
        %v943 = vsel %vm931, %v926, %v655
        %v944 = vsel %vm931, %v927, %v657
        %v945 = vsel %vm931, %v928, %v659
        %v946 = vsel %vm931, %v929, %v661
        %v947 = vsel %vm931, %v930, %v663
        %vm948 = vcmask 785408
        %v949 = vsel %vm948, %v932, %v683
        %v950 = vsel %vm948, %v933, %v685
        %v951 = vsel %vm948, %v934, %v687
        %v952 = vsel %vm948, %v935, %v689
        %v953 = vsel %vm948, %v936, %v691
        %v954 = vsel %vm948, %v937, %v693
        %v955 = vsel %vm948, %v938, %v695
        %v956 = vsel %vm948, %v939, %v697
        %v957 = vsel %vm948, %v940, %v699
        %v958 = vsel %vm948, %v941, %v701
        %v959 = vsel %vm948, %v942, %v703
        %v960 = vsel %vm948, %v943, %v705
        %v961 = vsel %vm948, %v944, %v707
        %v962 = vsel %vm948, %v945, %v709
        %v963 = vsel %vm948, %v946, %v711
        %v964 = vsel %vm948, %v947, %v713
        %v965 = vsel %vm914, %v510, %v758
        %v966 = vsel %vm914, %v512, %v760
        %v967 = vsel %vm914, %v515, %v762
        %v968 = vsel %vm914, %v517, %v764
        %v969 = vsel %vm914, %v520, %v766
        %v970 = vsel %vm914, %v522, %v768
        %v971 = vsel %vm914, %v525, %v770
        %v972 = vsel %vm914, %v527, %v772
        %v973 = vsel %vm914, %v530, %v774
        %v974 = vsel %vm914, %v532, %v776
        %v975 = vsel %vm914, %v535, %v778
        %v976 = vsel %vm914, %v537, %v780
        %v977 = vsel %vm914, %v540, %v782
        %v978 = vsel %vm914, %v542, %v784
        %v979 = vsel %vm914, %v733, %v786
        %v980 = vsel %vm914, %v735, %v788
        %v981 = vsel %vm931, %v965, %v808
        %v982 = vsel %vm931, %v966, %v810
        %v983 = vsel %vm931, %v967, %v812
        %v984 = vsel %vm931, %v968, %v814
        %v985 = vsel %vm931, %v969, %v816
        %v986 = vsel %vm931, %v970, %v818
        %v987 = vsel %vm931, %v971, %v820
        %v988 = vsel %vm931, %v972, %v822
        %v989 = vsel %vm931, %v973, %v824
        %v990 = vsel %vm931, %v974, %v826
        %v991 = vsel %vm931, %v975, %v828
        %v992 = vsel %vm931, %v976, %v830
        %v993 = vsel %vm931, %v977, %v832
        %v994 = vsel %vm931, %v978, %v834
        %v995 = vsel %vm931, %v979, %v836
        %v996 = vsel %vm931, %v980, %v838
        %v997 = vsel %vm948, %v981, %v862
        %v998 = vsel %vm948, %v982, %v864
        %v999 = vsel %vm948, %v983, %v866
        %v1000 = vsel %vm948, %v984, %v868
        %v1001 = vsel %vm948, %v985, %v870
        %v1002 = vsel %vm948, %v986, %v872
        %v1003 = vsel %vm948, %v987, %v874
        %v1004 = vsel %vm948, %v988, %v876
        %v1005 = vsel %vm948, %v989, %v878
        %v1006 = vsel %vm948, %v990, %v880
        %v1007 = vsel %vm948, %v991, %v882
        %v1008 = vsel %vm948, %v992, %v884
        %v1009 = vsel %vm948, %v993, %v886
        %v1010 = vsel %vm948, %v994, %v888
        %v1011 = vsel %vm948, %v995, %v890
        %v1012 = vsel %vm948, %v996, %v892
        %v1013 = vld [vmem:[%s3] sm:$0xff]
        %v1014 = vld [vmem:[%s3 + $0x8] sm:$0xff]
        %v1015 = vld [vmem:[%s3 + $0x10] sm:$0xff]
        %v1016 = vld [vmem:[%s3 + $0x18] sm:$0xff]
        %v1017 = vld [vmem:[%s3 + $0x20] sm:$0xff]
        %v1018 = vld [vmem:[%s3 + $0x28] sm:$0xff]
        %v1019 = vld [vmem:[%s3 + $0x30] sm:$0xff]
        %v1020 = vld [vmem:[%s3 + $0x38] sm:$0xff]
        %v1021 = vld [vmem:[%s3 + $0x40] sm:$0xff]
        %v1022 = vld [vmem:[%s3 + $0x48] sm:$0xff]
        %v1023 = vld [vmem:[%s3 + $0x50] sm:$0xff]
        %v1024 = vld [vmem:[%s3 + $0x58] sm:$0xff]
        %v1025 = vld [vmem:[%s3 + $0x60] sm:$0xff]
        %v1026 = vld [vmem:[%s3 + $0x68] sm:$0xff]
        %v1027 = vld [vmem:[%s3 + $0x70] sm:$0xff]
        %v1028 = vld [vmem:[%s3 + $0x78] sm:$0xff]
        %v1029 = vld [vmem:[%s3 + $0x80] sm:$0xff]
        %v1030 = vld [vmem:[%s3 + $0x88] sm:$0xff]
        %v1031 = vld [vmem:[%s3 + $0x90] sm:$0xff]
        %v1032 = vld [vmem:[%s3 + $0x98] sm:$0xff]
        %v1033 = vld [vmem:[%s3 + $0xa0] sm:$0xff]
        %v1034 = vld [vmem:[%s3 + $0xa8] sm:$0xff]
        %v1035 = vld [vmem:[%s3 + $0xb0] sm:$0xff]
        %v1036 = vld [vmem:[%s3 + $0xb8] sm:$0xff]
        %v1037 = vld [vmem:[%s3 + $0xc0] sm:$0xff]
        %v1038 = vld [vmem:[%s3 + $0xc8] sm:$0xff]
        %v1039 = vld [vmem:[%s3 + $0xd0] sm:$0xff]
        %v1040 = vld [vmem:[%s3 + $0xd8] sm:$0xff]
        %v1041 = vld [vmem:[%s3 + $0xe0] sm:$0xff]
        %v1042 = vld [vmem:[%s3 + $0xe8] sm:$0xff]
        %v1043 = vld [vmem:[%s3 + $0xf0] sm:$0xff]
        %v1044 = vld [vmem:[%s3 + $0xf8] sm:$0xff]
        %v1045 = vld [vmem:[%s3 + $0x100] sm:$0xff]
        %v1046 = vld [vmem:[%s3 + $0x108] sm:$0xff]
        %v1047 = vld [vmem:[%s3 + $0x110] sm:$0xff]
        %v1048 = vld [vmem:[%s3 + $0x118] sm:$0xff]
        %v1049 = vld [vmem:[%s4] sm:$0x1]
        %v1051 = vlaneseq
        %v1052 = vshrl.u32 %v1051, 7
        %v1053 = vsub.s32 0, %v1052
        %v1054 = vrot.slane %v1049, %v1053
        %v1056 = vsel %vm914, %v604, 0
        %v1058 = vsel %vm914, %v606, 0
        %v1060 = vsel %vm914, %v609, 0
        %v1062 = vsel %vm914, %v611, 0
        %v1064 = vsel %vm914, %v614, 0
        %v1066 = vsel %vm914, %v616, 0
        %v1068 = vsel %vm914, %v619, 0
        %v1070 = vsel %vm914, %v621, 0
        %v1072 = vsel %vm914, %v624, 0
        %v1074 = vsel %vm914, %v626, 0
        %v1076 = vsel %vm914, %v629, 0
        %v1078 = vsel %vm914, %v631, 0
        %v1080 = vsel %vm914, %v754, 0
        %v1082 = vsel %vm914, %v756, 0
        %v1084 = vsel %vm914, %v911, 0
        %v1086 = vsel %vm914, %v913, 0
        %1088 = vmatprep.subr.mxu0 0.0
        %1089 = vmatpush1.msra.mxu0 %v1013
        %1090 = vmatprep.subr.mxu0 0.0
        %1091 = vmatpush1.msra.mxu0 %v1014
        %1092 = vmatprep.subr.mxu0 0.0
        %1093 = vmatpush1.msra.mxu0 %v1015
        %1094 = vmatprep.subr.mxu0 0.0
        %1095 = vmatpush1.msra.mxu0 %v1016
        %1096 = vmatprep.subr.mxu0 0.0
        %1097 = vmatpush1.msra.mxu0 %v1017
        %1098 = vmatprep.subr.mxu0 0.0
        %1099 = vmatpush1.msra.mxu0 %v1018
        %1100 = vmatprep.subr.mxu0 0.0
        %1101 = vmatpush1.msra.mxu0 %v1019
        %1102 = vmatprep.subr.mxu0 0.0
        %1103 = vmatpush1.msra.mxu0 %v1020
        %1104 = vmatprep.subr.mxu0 0.0
        %1105 = vmatpush1.msra.mxu0 %v1021
        %1106 = vmatprep.subr.mxu0 0.0
        %1107 = vmatpush1.msra.mxu0 %v1022
        %1108 = vmatprep.subr.mxu0 0.0
        %1109 = vmatpush1.msra.mxu0 %v1023
        %1110 = vmatprep.subr.mxu0 0.0
        %1111 = vmatpush1.msra.mxu0 %v1024
        %1112 = vmatprep.subr.mxu0 0.0
        %1113 = vmatpush1.msra.mxu0 %v1025
        %1114 = vmatprep.subr.mxu0 0.0
        %1115 = vmatpush1.msra.mxu0 %v1026
        %1116 = vmatprep.subr.mxu0 0.0
        %1117 = vmatpush1.msra.mxu0 %v1027
        %1118 = vmatprep.subr.mxu0 0.0
        %1119 = vmatpush1.msra.mxu0 %v1028
        %1120 = vmatprep.subr.mxu0 0.0
        %1121 = vmatpush1.msra.mxu0 %v1029
        %1122 = vmatprep.subr.mxu0 0.0
        %1123 = vmatpush1.msra.mxu0 %v1030
        %1124 = vmatprep.subr.mxu0 0.0
        %1125 = vmatpush1.msra.mxu0 %v1031
        %1126 = vmatprep.subr.mxu0 0.0
        %1127 = vmatpush1.msra.mxu0 %v1032
        %1128 = vmatprep.subr.mxu0 0.0
        %1129 = vmatpush1.msra.mxu0 %v1033
        %1130 = vmatprep.subr.mxu0 0.0
        %1131 = vmatpush1.msra.mxu0 %v1034
        %1132 = vmatprep.subr.mxu0 0.0
        %1133 = vmatpush1.msra.mxu0 %v1035
        %1134 = vmatprep.subr.mxu0 0.0
        %1135 = vmatpush1.msra.mxu0 %v1036
        %1136 = vmatprep.subr.mxu0 0.0
        %1137 = vmatpush1.msra.mxu0 %v1037
        %1138 = vmatprep.subr.mxu0 0.0
        %1139 = vmatpush1.msra.mxu0 %v1038
        %1140 = vmatprep.subr.mxu0 0.0
        %1141 = vmatpush1.msra.mxu0 %v1039
        %1142 = vmatprep.subr.mxu0 0.0
        %1143 = vmatpush1.msra.mxu0 %v1040
        %1144 = vmatprep.subr.mxu0 0.0
        %1145 = vmatpush1.msra.mxu0 %v1041
        %1146 = vmatprep.subr.mxu0 0.0
        %1147 = vmatpush1.msra.mxu0 %v1042
        %1148 = vmatprep.subr.mxu0 0.0
        %1149 = vmatpush1.msra.mxu0 %v1043
        %1150 = vmatprep.subr.mxu0 0.0
        %1151 = vmatpush1.msra.mxu0 %v1044
        %1152 = vmatprep.mubr.f32.mxu0 %v997
        %1153 = vmatmul.mubr.f32.gmra.mrb[0].mxu0 %v949
        %v1154 = vpop.f32.mrb[0].mxu0
        %v1155 = vadd.f32 %v1054, %v1154
        %v1156 = vpop.f32.mrb[0].mxu0
        %1157 = vmatprep.mubr.f32.mxu0 %v998
        %1158 = vmatmul.mubr.f32.gmra.mrb[0].mxu0 %v950
        %v1159 = vpop.f32.mrb[0].mxu0
        %v1160 = vadd.f32 %v1054, %v1159
        %v1161 = vpop.f32.mrb[0].mxu0
        %1162 = vmatprep.mubr.f32.mxu0 %v999
        %1163 = vmatmul.mubr.f32.gmra.mrb[0].mxu0 %v951
        %v1164 = vpop.f32.mrb[0].mxu0
        %v1165 = vadd.f32 %v1054, %v1164
        %v1166 = vpop.f32.mrb[0].mxu0
        %1167 = vmatprep.mubr.f32.mxu0 %v1000
        %1168 = vmatmul.mubr.f32.gmra.mrb[0].mxu0 %v952
        %v1169 = vpop.f32.mrb[0].mxu0
        %v1170 = vadd.f32 %v1054, %v1169
        %v1171 = vpop.f32.mrb[0].mxu0
        %1172 = vmatprep.mubr.f32.mxu0 %v1001
        %1173 = vmatmul.mubr.f32.gmra.mrb[0].mxu0 %v953
        %v1174 = vpop.f32.mrb[0].mxu0
        %v1175 = vadd.f32 %v1054, %v1174
        %v1176 = vpop.f32.mrb[0].mxu0
        %1177 = vmatprep.mubr.f32.mxu0 %v1002
        %1178 = vmatmul.mubr.f32.gmra.mrb[0].mxu0 %v954
        %v1179 = vpop.f32.mrb[0].mxu0
        %v1180 = vadd.f32 %v1054, %v1179
        %v1181 = vpop.f32.mrb[0].mxu0
        %1182 = vmatprep.mubr.f32.mxu0 %v1003
        %1183 = vmatmul.mubr.f32.gmra.mrb[0].mxu0 %v955
        %v1184 = vpop.f32.mrb[0].mxu0
        %v1185 = vadd.f32 %v1054, %v1184
        %v1186 = vpop.f32.mrb[0].mxu0
        %1187 = vmatprep.mubr.f32.mxu0 %v1004
        %1188 = vmatmul.mubr.f32.gmra.mrb[0].mxu0 %v956
        %v1189 = vpop.f32.mrb[0].mxu0
        %v1190 = vadd.f32 %v1054, %v1189
        %v1191 = vpop.f32.mrb[0].mxu0
        %1192 = vmatprep.mubr.f32.mxu0 %v1005
        %1193 = vmatmul.mubr.f32.gmra.mrb[0].mxu0 %v957
        %v1194 = vpop.f32.mrb[0].mxu0
        %v1195 = vadd.f32 %v1054, %v1194
        %v1196 = vpop.f32.mrb[0].mxu0
        %1197 = vmatprep.mubr.f32.mxu0 %v1006
        %1198 = vmatmul.mubr.f32.gmra.mrb[0].mxu0 %v958
        %v1199 = vpop.f32.mrb[0].mxu0
        %v1200 = vadd.f32 %v1054, %v1199
        %v1201 = vpop.f32.mrb[0].mxu0
        %1202 = vmatprep.mubr.f32.mxu0 %v1007
        %1203 = vmatmul.mubr.f32.gmra.mrb[0].mxu0 %v959
        %v1204 = vpop.f32.mrb[0].mxu0
        %v1205 = vadd.f32 %v1054, %v1204
        %v1206 = vpop.f32.mrb[0].mxu0
        %1207 = vmatprep.mubr.f32.mxu0 %v1008
        %1208 = vmatmul.mubr.f32.gmra.mrb[0].mxu0 %v960
        %v1209 = vpop.f32.mrb[0].mxu0
        %v1210 = vadd.f32 %v1054, %v1209
        %v1211 = vpop.f32.mrb[0].mxu0
        %1212 = vmatprep.mubr.f32.mxu0 %v1009
        %1213 = vmatmul.mubr.f32.gmra.mrb[0].mxu0 %v961
        %v1214 = vpop.f32.mrb[0].mxu0
        %v1215 = vadd.f32 %v1054, %v1214
        %v1216 = vpop.f32.mrb[0].mxu0
        %1217 = vmatprep.mubr.f32.mxu0 %v1010
        %1218 = vmatmul.mubr.f32.gmra.mrb[0].mxu0 %v962
        %v1219 = vpop.f32.mrb[0].mxu0
        %v1220 = vadd.f32 %v1054, %v1219
        %v1221 = vpop.f32.mrb[0].mxu0
        %1222 = vmatprep.mubr.f32.mxu0 %v1011
        %1223 = vmatmul.mubr.f32.gmra.mrb[0].mxu0 %v963
        %v1224 = vpop.f32.mrb[0].mxu0
        %v1225 = vadd.f32 %v1054, %v1224
        %v1226 = vpop.f32.mrb[0].mxu0
        %1227 = vmatprep.mubr.f32.mxu0 %v1012
        %1228 = vmatmul.mubr.f32.gmra.mrb[0].mxu0 %v964
        %v1229 = vpop.f32.mrb[0].mxu0
        %v1230 = vadd.f32 %v1054, %v1229
        %v1231 = vpop.f32.mrb[0].mxu0
        %1232 = vdwg.mxu0
        %1233 = vmatprep.subr.mxu0 0.0
        %1234 = vmatpush1.msra.mxu0 %v1045
        %1235 = vmatprep.subr.mxu0 0.0
        %1236 = vmatpush1.msra.mxu0 %v1046
        %1237 = vmatprep.subr.mxu0 0.0
        %1238 = vmatpush1.msra.mxu0 %v1047
        %1239 = vmatprep.subr.mxu0 0.0
        %1240 = vmatpush1.msra.mxu0 %v1048
        %1241 = vmatprep.subr.mxu0 0.0
        %1242 = vmatpush1.msra.mxu0 0.0
        %1243 = vmatprep.subr.mxu0 0.0
        %1244 = vmatpush1.msra.mxu0 0.0
        %1245 = vmatprep.subr.mxu0 0.0
        %1246 = vmatpush1.msra.mxu0 0.0
        %1247 = vmatprep.subr.mxu0 0.0
        %1248 = vmatpush1.msra.mxu0 0.0
        %1249 = vmatprep.subr.mxu0 0.0
        %1250 = vmatpush1.msra.mxu0 0.0
        %1251 = vmatprep.subr.mxu0 0.0
        %1252 = vmatpush1.msra.mxu0 0.0
        %1253 = vmatprep.subr.mxu0 0.0
        %1254 = vmatpush1.msra.mxu0 0.0
        %1255 = vmatprep.subr.mxu0 0.0
        %1256 = vmatpush1.msra.mxu0 0.0
        %1257 = vmatprep.subr.mxu0 0.0
        %1258 = vmatpush1.msra.mxu0 0.0
        %1259 = vmatprep.subr.mxu0 0.0
        %1260 = vmatpush1.msra.mxu0 0.0
        %1261 = vmatprep.subr.mxu0 0.0
        %1262 = vmatpush1.msra.mxu0 0.0
        %1263 = vmatprep.subr.mxu0 0.0
        %1264 = vmatpush1.msra.mxu0 0.0
        %1265 = vmatprep.subr.mxu0 0.0
        %1266 = vmatpush1.msra.mxu0 0.0
        %1267 = vmatprep.subr.mxu0 0.0
        %1268 = vmatpush1.msra.mxu0 0.0
        %1269 = vmatprep.subr.mxu0 0.0
        %1270 = vmatpush1.msra.mxu0 0.0
        %1271 = vmatprep.subr.mxu0 0.0
        %1272 = vmatpush1.msra.mxu0 0.0
        %1273 = vmatprep.subr.mxu0 0.0
        %1274 = vmatpush1.msra.mxu0 0.0
        %1275 = vmatprep.subr.mxu0 0.0
        %1276 = vmatpush1.msra.mxu0 0.0
        %1277 = vmatprep.subr.mxu0 0.0
        %1278 = vmatpush1.msra.mxu0 0.0
        %1279 = vmatprep.subr.mxu0 0.0
        %1280 = vmatpush1.msra.mxu0 0.0
        %1281 = vmatprep.subr.mxu0 0.0
        %1282 = vmatpush1.msra.mxu0 0.0
        %1283 = vmatprep.subr.mxu0 0.0
        %1284 = vmatpush1.msra.mxu0 0.0
        %1285 = vmatprep.subr.mxu0 0.0
        %1286 = vmatpush1.msra.mxu0 0.0
        %1287 = vmatprep.subr.mxu0 0.0
        %1288 = vmatpush1.msra.mxu0 0.0
        %1289 = vmatprep.subr.mxu0 0.0
        %1290 = vmatpush1.msra.mxu0 0.0
        %1291 = vmatprep.subr.mxu0 0.0
        %1292 = vmatpush1.msra.mxu0 0.0
        %1293 = vmatprep.subr.mxu0 0.0
        %1294 = vmatpush1.msra.mxu0 0.0
        %1295 = vmatprep.subr.mxu0 0.0
        %1296 = vmatpush1.msra.mxu0 0.0
        %1297 = vmatprep.mubr.f32.mxu0 0.0
        %1298 = vmatmul.mubr.f32.gmra.mrb[0].mxu0 %v1056
        %v1299 = vpop.f32.mrb[0].mxu0
        %v1300 = vadd.f32 %v1155, %v1299
        %v1301 = vpop.f32.mrb[0].mxu0
        %1302 = vmatprep.mubr.f32.mxu0 0.0
        %1303 = vmatmul.mubr.f32.gmra.mrb[0].mxu0 %v1058
        %v1304 = vpop.f32.mrb[0].mxu0
        %v1305 = vadd.f32 %v1160, %v1304
        %v1306 = vpop.f32.mrb[0].mxu0
        %1307 = vmatprep.mubr.f32.mxu0 0.0
        %1308 = vmatmul.mubr.f32.gmra.mrb[0].mxu0 %v1060
        %v1309 = vpop.f32.mrb[0].mxu0
        %v1310 = vadd.f32 %v1165, %v1309
        %v1311 = vpop.f32.mrb[0].mxu0
        %1312 = vmatprep.mubr.f32.mxu0 0.0
        %1313 = vmatmul.mubr.f32.gmra.mrb[0].mxu0 %v1062
        %v1314 = vpop.f32.mrb[0].mxu0
        %v1315 = vadd.f32 %v1170, %v1314
        %v1316 = vpop.f32.mrb[0].mxu0
        %1317 = vmatprep.mubr.f32.mxu0 0.0
        %1318 = vmatmul.mubr.f32.gmra.mrb[0].mxu0 %v1064
        %v1319 = vpop.f32.mrb[0].mxu0
        %v1320 = vadd.f32 %v1175, %v1319
        %v1321 = vpop.f32.mrb[0].mxu0
        %1322 = vmatprep.mubr.f32.mxu0 0.0
        %1323 = vmatmul.mubr.f32.gmra.mrb[0].mxu0 %v1066
        %v1324 = vpop.f32.mrb[0].mxu0
        %v1325 = vadd.f32 %v1180, %v1324
        %v1326 = vpop.f32.mrb[0].mxu0
        %1327 = vmatprep.mubr.f32.mxu0 0.0
        %1328 = vmatmul.mubr.f32.gmra.mrb[0].mxu0 %v1068
        %v1329 = vpop.f32.mrb[0].mxu0
        %v1330 = vadd.f32 %v1185, %v1329
        %v1331 = vpop.f32.mrb[0].mxu0
        %1332 = vmatprep.mubr.f32.mxu0 0.0
        %1333 = vmatmul.mubr.f32.gmra.mrb[0].mxu0 %v1070
        %v1334 = vpop.f32.mrb[0].mxu0
        %v1335 = vadd.f32 %v1190, %v1334
        %v1336 = vpop.f32.mrb[0].mxu0
        %1337 = vmatprep.mubr.f32.mxu0 0.0
        %1338 = vmatmul.mubr.f32.gmra.mrb[0].mxu0 %v1072
        %v1339 = vpop.f32.mrb[0].mxu0
        %v1340 = vadd.f32 %v1195, %v1339
        %v1341 = vpop.f32.mrb[0].mxu0
        %1342 = vmatprep.mubr.f32.mxu0 0.0
        %1343 = vmatmul.mubr.f32.gmra.mrb[0].mxu0 %v1074
        %v1344 = vpop.f32.mrb[0].mxu0
        %v1345 = vadd.f32 %v1200, %v1344
        %v1346 = vpop.f32.mrb[0].mxu0
        %1347 = vmatprep.mubr.f32.mxu0 0.0
        %1348 = vmatmul.mubr.f32.gmra.mrb[0].mxu0 %v1076
        %v1349 = vpop.f32.mrb[0].mxu0
        %v1350 = vadd.f32 %v1205, %v1349
        %v1351 = vpop.f32.mrb[0].mxu0
        %1352 = vmatprep.mubr.f32.mxu0 0.0
        %1353 = vmatmul.mubr.f32.gmra.mrb[0].mxu0 %v1078
        %v1354 = vpop.f32.mrb[0].mxu0
        %v1355 = vadd.f32 %v1210, %v1354
        %v1356 = vpop.f32.mrb[0].mxu0
        %1357 = vmatprep.mubr.f32.mxu0 0.0
        %1358 = vmatmul.mubr.f32.gmra.mrb[0].mxu0 %v1080
        %v1359 = vpop.f32.mrb[0].mxu0
        %v1360 = vadd.f32 %v1215, %v1359
        %v1361 = vpop.f32.mrb[0].mxu0
        %1362 = vmatprep.mubr.f32.mxu0 0.0
        %1363 = vmatmul.mubr.f32.gmra.mrb[0].mxu0 %v1082
        %v1364 = vpop.f32.mrb[0].mxu0
        %v1365 = vadd.f32 %v1220, %v1364
        %v1366 = vpop.f32.mrb[0].mxu0
        %1367 = vmatprep.mubr.f32.mxu0 0.0
        %1368 = vmatmul.mubr.f32.gmra.mrb[0].mxu0 %v1084
        %v1369 = vpop.f32.mrb[0].mxu0
        %v1370 = vadd.f32 %v1225, %v1369
        %v1371 = vpop.f32.mrb[0].mxu0
        %1372 = vmatprep.mubr.f32.mxu0 0.0
        %1373 = vmatmul.mubr.f32.gmra.mrb[0].mxu0 %v1086
        %v1374 = vpop.f32.mrb[0].mxu0
        %v1375 = vadd.f32 %v1230, %v1374
        %v1376 = vpop.f32.mrb[0].mxu0
        %1377 = vdwg.mxu0
        %v1378 = vmax.f32 %v1300, 0.0
        %v1379 = vmax.f32 %v1305, 0.0
        %v1380 = vmax.f32 %v1310, 0.0
        %v1381 = vmax.f32 %v1315, 0.0
        %v1382 = vmax.f32 %v1320, 0.0
        %v1383 = vmax.f32 %v1325, 0.0
        %v1384 = vmax.f32 %v1330, 0.0
        %v1385 = vmax.f32 %v1335, 0.0
        %v1386 = vmax.f32 %v1340, 0.0
        %v1387 = vmax.f32 %v1345, 0.0
        %v1388 = vmax.f32 %v1350, 0.0
        %v1389 = vmax.f32 %v1355, 0.0
        %v1390 = vmax.f32 %v1360, 0.0
        %v1391 = vmax.f32 %v1365, 0.0
        %v1392 = vmax.f32 %v1370, 0.0
        %v1393 = vmax.f32 %v1375, 0.0
        %1394 = vxpose.xlu0.b32.start [1/16] %v1378, 128
        %1395 = vxpose.xlu0.b32.cont [2/16] %v1379, 128
        %1396 = vxpose.xlu0.b32.cont [3/16] %v1380, 128
        %1397 = vxpose.xlu0.b32.cont [4/16] %v1381, 128
        %1398 = vxpose.xlu0.b32.cont [5/16] %v1382, 128
        %1399 = vxpose.xlu0.b32.cont [6/16] %v1383, 128
        %1400 = vxpose.xlu0.b32.cont [7/16] %v1384, 128
        %1401 = vxpose.xlu0.b32.cont [8/16] %v1385, 128
        %1402 = vxpose.xlu0.b32.cont [9/16] %v1386, 128
        %1403 = vxpose.xlu0.b32.cont [10/16] %v1387, 128
        %1404 = vxpose.xlu0.b32.cont [11/16] %v1388, 128
        %1405 = vxpose.xlu0.b32.cont [12/16] %v1389, 128
        %1406 = vxpose.xlu0.b32.cont [13/16] %v1390, 128
        %1407 = vxpose.xlu0.b32.cont [14/16] %v1391, 128
        %1408 = vxpose.xlu0.b32.cont [15/16] %v1392, 128
        %1409 = vxpose.xlu0.b32.end [16/16] %v1393, 128
        %v1410 = vpop.trf.xlu0
        %v1411 = vpop.trf.xlu0
        %v1412 = vpop.trf.xlu0
        %v1413 = vpop.trf.xlu0
        %v1414 = vpop.trf.xlu0
        %v1415 = vpop.trf.xlu0
        %v1416 = vpop.trf.xlu0
        %v1417 = vpop.trf.xlu0
        %v1418 = vpop.trf.xlu0
        %v1419 = vpop.trf.xlu0
        %v1420 = vpop.trf.xlu0
        %v1421 = vpop.trf.xlu0
        %v1422 = vpop.trf.xlu0
        %v1423 = vpop.trf.xlu0
        %v1424 = vpop.trf.xlu0
        %v1425 = vpop.trf.xlu0
        %v1426 = vld [vmem:[%s5] sm:$0xff]
        %v1427 = vld [vmem:[%s5 + $0x8] sm:$0xff]
        %1429 = vset.pattern.permute.xlu0 0
        %1430 = vperm.xlu0 %1429, %v1426
        %v1431 = vpop.permute.xlu0 %1430
        %1434 = vset.pattern.permute.xlu0 0
        %1435 = vperm.xlu0 %1434, %v1427
        %v1436 = vpop.permute.xlu0 %1435
        %v1438 = vmul.f32 %v1410, %v1431
        %v1439 = vmul.f32 %v1411, %v1436
        %v1440 = vadd.f32 %v1438, %v1439
        %v1441 = vrot.slane %v1440, 4
        %v1442 = vadd.f32 %v1440, %v1441
        %v1443 = vrot.slane %v1442, 2
        %v1444 = vadd.f32 %v1442, %v1443
        %v1445 = vrot.slane %v1444, 1
        %v1446 = vadd.f32 %v1444, %v1445
        %s1447 = sld [smem:[#allocation2]]
        %v1448 = vstv %s1447
        %v1449 = vadd.f32 %v1446, %v1448
        %1450 = vst [vmem:[%s388] sm:$0x1] %v1449
        %s1451 = sand.u32 %s228, 1
        %s1452 = scalar_lea.sflag [#allocation4], %s1451
        %s1453 = sand.u32 %s228, 1
        %s1454 = scalar_lea.vmem [#allocation3], %s1453
        // Predicated region
        $region49: #{tpu_custom_call.1} parent=47 // pred_check
          %p1455 = pneg %p238
        $region50: #{tpu_custom_call.1} parent=47 // pred_check_branch
          %1457 = sbr.rel (%p1455) target = $region52
        $region51: #{tpu_custom_call.1} parent=47 // pred_region
          %s1459 = ssub.s32 16, 16
          %1460 = vsyncadd %s1452, %s1459
          %s1461 = smul.addr %s26, 2
          %s1462 = sadd.s32 %s27, %s1461
          %s1463 = smul.addr %s1462, 16
          %s1464 = scalar_lea.hbm %s7, %s1463
          %s1466 = sshll.u32 %s1454, 4
          %s1467 = int_to_ptr.vmem [resolvable:$true] %s1466
          %1469 = dma.vmem_to_hbm [thread:$0]  %s1467, 16, %s1464, %s1452
        $region52: #{tpu_custom_call.1} parent=47 // pred_fallthru
          _
      $region48: #{tpu_custom_call.1} parent=5 // pred_fallthru
        _
      %p1470 = scmp.le.s32.totalorder 2, %s17
      // Predicated region
      $region53: #{tpu_custom_call.1} parent=5 // pred_check
        %p1471 = pneg %p1470
      $region54: #{tpu_custom_call.1} parent=5 // pred_check_branch
        %1473 = sbr.rel (%p1471) target = $region56
      $region55: #{tpu_custom_call.1} parent=5 // pred_region
        %s1474 = ssub.s32 %s17, 2
        // Predicated region
        $region57: #{tpu_custom_call.1} parent=55 // pred_check
          %p1475 = pneg %p244
        $region58: #{tpu_custom_call.1} parent=55 // pred_check_branch
          %1477 = sbr.rel (%p1475) target = $region60
        $region59: #{tpu_custom_call.1} parent=55 // pred_region
          %s1478 = sand.u32 %s229, 1
          %s1479 = scalar_lea.sflag [#allocation4], %s1478
          %s1480 = sand.u32 %s229, 1
          %s1481 = scalar_lea.vmem [#allocation3], %s1480
          %1482 = dma.done %s1479, 16
        $region60: #{tpu_custom_call.1} parent=55 // pred_fallthru
          _
      $region56: #{tpu_custom_call.1} parent=5 // pred_fallthru
        _
    $region6: #{tpu_custom_call.1} parent=1 // loop_footer
      %s21 = sadd.s32 1, %s17
    $region7: #{tpu_custom_call.1} parent=1 // loop_footer_branch
      %16 = sbr.rel target = $region3
    $region8: #{tpu_custom_call.1} parent=1 // loop_exit
      _
    %1483 = vsyncpa [#allocation4], 1
    %s1484 = scalar_lea.sflag [#allocation4], 1
    %1485 = vsyncpa %s1484, 1

</llo_original>
